<compile_context>
chip_gen: v7x
topology: tpu7x:2x2x1
jax: 0.10.0
libtpu: 0.0.40
codegen_flags: <defaults>
</compile_context>

<pallas_src>
import functools
import math

import jax
import jax.numpy as jnp
from jax.experimental import pallas as pl
from jax.experimental.pallas import tpu as pltpu

LN_EPS_BLOCK = 1e-5   # nn.LayerNorm default inside encoder blocks
LN_EPS_LAST = 1e-8    # SAS.last_layernorm eps


def _layernorm(x, g, b, eps):
    mu = jnp.mean(x, axis=-1, keepdims=True)
    xc = x - mu
    var = jnp.mean(xc * xc, axis=-1, keepdims=True)
    return xc * jax.lax.rsqrt(var + eps) * g + b


# ---------------------------------------------------------------------------
# Fused kernel: grid = (batch_block, layer).  Activation + mask live in VMEM
# scratch across the whole layer loop.
# ---------------------------------------------------------------------------
def sas_fused_kernel(keep_k_ref, keep_col_ref, x_ref,
                     wq_ref, wk_ref, wv_ref, wo_ref,
                     bq_ref, bk_ref, bv_ref, bo_ref,
                     ln1_g_ref, ln1_b_ref, ln2_g_ref, ln2_b_ref,
                     w1_ref, b1_ref, w2_ref, b2_ref,
                     last_g_ref, last_b_ref,
                     embed_ref,
                     act_ref, amask_ref, ctx_ref, *, n_heads):
    l = pl.program_id(1)
    Bb, S, D = x_ref.shape
    M = Bb * S
    H = n_heads
    hd = D // H
    scale = 1.0 / math.sqrt(hd)

    # --- layer 0: load activation into resident scratch; build the
    #     causal + key-padding additive mask once per batch block ---
    @pl.when(l == 0)
    def _():
        act_ref[...] = x_ref[...].astype(jnp.float32).reshape(M, D)
        q_idx = jax.lax.broadcasted_iota(jnp.int32, (Bb, S, S), 1)
        k_idx = jax.lax.broadcasted_iota(jnp.int32, (Bb, S, S), 2)
        valid = (k_idx <= q_idx) & (keep_k_ref[...] > 0.5)   # (Bb, S, S)
        amask_ref[...] = jnp.where(valid, 0.0, -1e30)

    x = act_ref[...]                         # (M, D) f32, resident across layers
    keep_col = keep_col_ref[...]             # (M, 1)  1 = valid query position
    wdt = wq_ref.dtype                       # bf16 weight dtype

    # --- pre-attention layernorm (query path) ---
    q_in = _layernorm(x, ln1_g_ref[0], ln1_b_ref[0], LN_EPS_BLOCK)

    # --- fused full-width projections: (M, D) x (D, D), bf16 MXU, f32 accum ---
    q2 = jnp.dot(q_in.astype(wdt), wq_ref[0],
                 preferred_element_type=jnp.float32) + bq_ref[0]
    k2 = jnp.dot(x.astype(wdt), wk_ref[0],
                 preferred_element_type=jnp.float32) + bk_ref[0]
    v2 = jnp.dot(x.astype(wdt), wv_ref[0],
                 preferred_element_type=jnp.float32) + bv_ref[0]

    # --- per-sequence / per-head scores + softmax + PV (f32, small matmuls) ---
    for b in range(Bb):                      # static: Bb is small by construction
        r0 = b * S
        q_b = q2[r0:r0 + S, :]               # (S, D)
        k_bt = k2[r0:r0 + S, :].T            # (D, S) — one transpose per sequence
        v_b = v2[r0:r0 + S, :]
        amask_b = amask_ref[b]               # (S, S) hoisted additive mask
        for h in range(H):                   # TODO(synk): use fori_loop for H >> 4
            c0 = h * hd
            sh = jnp.dot(q_b[:, c0:c0 + hd], k_bt[c0:c0 + hd, :],
                         preferred_element_type=jnp.float32) * scale + amask_b
            m = jnp.max(sh, axis=-1, keepdims=True)
            ph = jnp.exp(sh - m)
            ph = ph * pl.reciprocal(jnp.sum(ph, axis=-1, keepdims=True),
                                    approx=True)
            ctx_ref[r0:r0 + S, c0:c0 + hd] = jnp.dot(
                ph, v_b[:, c0:c0 + hd], preferred_element_type=jnp.float32)

    # --- fused full-width output projection + SASRec residual + FFN ---
    attn = jnp.dot(ctx_ref[...].astype(wdt), wo_ref[0],
                   preferred_element_type=jnp.float32) + bo_ref[0]
    x1 = q_in + attn
    y = _layernorm(x1, ln2_g_ref[0], ln2_b_ref[0], LN_EPS_BLOCK)
    h1 = jnp.maximum(
        jnp.dot(y.astype(wdt), w1_ref[0],
                preferred_element_type=jnp.float32) + b1_ref[0], 0.0)
    ffn = jnp.dot(h1.astype(wdt), w2_ref[0],
                  preferred_element_type=jnp.float32) + b2_ref[0]
    new_x = (y + ffn) * keep_col             # zero padded positions
    act_ref[...] = new_x

    # --- final layernorm fused into the last layer step ---
    @pl.when(l == pl.num_programs(1) - 1)
    def _():
        e = _layernorm(new_x, last_g_ref[...], last_b_ref[...], LN_EPS_LAST)
        embed_ref[...] = e.reshape(Bb, S, D).astype(embed_ref.dtype)


# ---------------------------------------------------------------------------
# Wrapper
# ---------------------------------------------------------------------------
def sas_forward(params, x_embed, pos_embed, neg_embed, padding_mask,
                *, n_heads, block_b=None):
    B, S, D = x_embed.shape
    L = len(params["layers"])

    if block_b is None:
        # Largest divisor of B that keeps the batch-grid extent >= 2 (feeds both
        # v7x TensorCores) and the resident activation scratch modest.
        cap = max(1, (4 << 20) // (S * D * 4))
        divisors = [d for d in range(1, B + 1) if B % d == 0 and d <= cap]
        pref = [d for d in divisors if B // d >= 2]
        block_b = max(pref) if pref else max(divisors)
    assert B % block_b == 0
    bg = B // block_b

    keep = 1.0 - padding_mask.astype(jnp.float32)        # (B, S), 1 = valid
    keep_k = keep.reshape(B, 1, S)                       # key-padding mask
    keep_col = keep.reshape(B * S, 1)                    # query zero-out

    def stack(name, dtype=jnp.float32):
        return jnp.stack([lyr[name] for lyr in params["layers"]]).astype(dtype)

    bf16 = jnp.bfloat16
    layer_args = (stack("wq", bf16), stack("wk", bf16),
                  stack("wv", bf16), stack("wo", bf16),
                  stack("bq"), stack("bk"), stack("bv"), stack("bo"),
                  stack("ln1_g"), stack("ln1_b"), stack("ln2_g"), stack("ln2_b"),
                  stack("w1", bf16), stack("b1"), stack("w2", bf16), stack("b2"))

    seq_spec = pl.BlockSpec((block_b, S, D), lambda b, l: (b, 0, 0))
    keepk_spec = pl.BlockSpec((block_b, 1, S), lambda b, l: (b, 0, 0))
    keepc_spec = pl.BlockSpec((block_b * S, 1), lambda b, l: (b, 0))

    def layer_spec(arr):
        _, r, c = arr.shape
        return pl.BlockSpec((1, r, c), lambda b, l: (l, 0, 0))

    def const_spec(arr):
        return pl.BlockSpec(arr.shape, lambda b, l: (0, 0))

    in_specs = ([keepk_spec, keepc_spec, seq_spec]
                + [layer_spec(a) for a in layer_args]
                + [const_spec(params["last_ln_g"]),
                   const_spec(params["last_ln_b"])])

    # VMEM budget: double-buffered per-layer weight slice + in/out activation
    # blocks + resident scratch (activation, mask, ctx).  Clamp to v7x's 64 MiB.
    itemsize = jnp.dtype(x_embed.dtype).itemsize
    per_layer_w = sum(int(a.size // L) * a.dtype.itemsize for a in layer_args)
    act_block = block_b * S * D * itemsize
    scratch_b = (2 * block_b * S * D + block_b * S * S) * 4
    est = 2 * per_layer_w + 4 * act_block + 2 * act_block + scratch_b
    vmem_limit = int(min(max(4 * est, 32 << 20), 64 << 20))

    kernel = functools.partial(sas_fused_kernel, n_heads=n_heads)
    embed = pl.pallas_call(
        kernel,
        out_shape=jax.ShapeDtypeStruct((B, S, D), x_embed.dtype),
        grid=(bg, L),
        in_specs=in_specs,
        out_specs=seq_spec,
        scratch_shapes=[pltpu.VMEM((block_b * S, D), jnp.float32),   # activation
                        pltpu.VMEM((block_b, S, S), jnp.float32),    # additive mask
                        pltpu.VMEM((block_b * S, D), jnp.float32)],  # attn context
        compiler_params=pltpu.CompilerParams(
            dimension_semantics=("parallel", "arbitrary"),
            vmem_limit_bytes=vmem_limit),
    )(keep_k, keep_col, x_embed, *layer_args,
      params["last_ln_g"], params["last_ln_b"])

    # pos/neg logits are trivially mem-bound reductions — do them in XLA.
    e32 = embed.astype(jnp.float32)
    pos_logits = jnp.sum(e32 * pos_embed.astype(jnp.float32), axis=-1)
    neg_logits = jnp.sum(e32 * neg_embed.astype(jnp.float32), axis=-1)
    return pos_logits, neg_logits, embed


# ---------------------------------------------------------------------------
# Pure-JAX reference (same math, f32 HIGHEST precision) for correctness check.
# ---------------------------------------------------------------------------
def sas_reference(params, x_embed, pos_embed, neg_embed, padding_mask, n_heads):
    B, S, D = x_embed.shape
    H = n_heads
    hd = D // H
    scale = 1.0 / math.sqrt(hd)
    hp = jax.lax.Precision.HIGHEST

    keep = 1.0 - padding_mask.astype(jnp.float32)                       # (B, S)
    causal = jnp.arange(S)[None, :] <= jnp.arange(S)[:, None]           # (S, S)
    valid = causal[None, :, :] & (keep[:, None, :] > 0.5)               # (B, S, S)

    x = x_embed.astype(jnp.float32)
    for p in params["layers"]:
        q_in = _layernorm(x, p["ln1_g"], p["ln1_b"], LN_EPS_BLOCK)
        q2 = jnp.einsum('bsd,de->bse', q_in, p["wq"], precision=hp) + p["bq"]
        k2 = jnp.einsum('bsd,de->bse', x, p["wk"], precision=hp) + p["bk"]
        v2 = jnp.einsum('bsd,de->bse', x, p["wv"], precision=hp) + p["bv"]
        qh = q2.reshape(B, S, H, hd)
        kh = k2.reshape(B, S, H, hd)
        vh = v2.reshape(B, S, H, hd)
        s = jnp.einsum('bqhd,bkhd->bhqk', qh, kh, precision=hp) * scale
        s = jnp.where(valid[:, None, :, :], s, -1e30)
        pa = jax.nn.softmax(s, axis=-1)
        ctx = jnp.einsum('bhqk,bkhd->bqhd', pa, vh, precision=hp).reshape(B, S, D)
        attn = jnp.einsum('bsd,de->bse', ctx, p["wo"], precision=hp) + p["bo"]
        x1 = q_in + attn
        y = _layernorm(x1, p["ln2_g"], p["ln2_b"], LN_EPS_BLOCK)
        h1 = jnp.maximum(jnp.einsum('bsd,df->bsf', y, p["w1"], precision=hp)
                         + p["b1"], 0.0)
        ffn = jnp.einsum('bsf,fd->bsd', h1, p["w2"], precision=hp) + p["b2"]
        x = (y + ffn) * keep[:, :, None]

    e = _layernorm(x, params["last_ln_g"], params["last_ln_b"], LN_EPS_LAST)
    pos = jnp.sum(e * pos_embed.astype(jnp.float32), axis=-1)
    neg = jnp.sum(e * neg_embed.astype(jnp.float32), axis=-1)
    return pos, neg, e


# ---------------------------------------------------------------------------
# Deterministic parameter init (shapes implied by the module's __init__).
# ---------------------------------------------------------------------------
def init_params(key, n_layers, n_heads, d_model, d_ff):
    def nrm(k, shape, scale=0.05):
        return scale * jax.random.normal(k, shape, jnp.float32)

    layers = []
    for li in range(n_layers):
        ks = jax.random.split(jax.random.fold_in(key, li), 16)
        layers.append(dict(
            wq=nrm(ks[0], (d_model, d_model)),
            wk=nrm(ks[1], (d_model, d_model)),
            wv=nrm(ks[2], (d_model, d_model)),
            wo=nrm(ks[3], (d_model, d_model)),
            bq=nrm(ks[4], (1, d_model), 0.02),
            bk=nrm(ks[5], (1, d_model), 0.02),
            bv=nrm(ks[6], (1, d_model), 0.02),
            bo=nrm(ks[7], (1, d_model), 0.02),
            ln1_g=1.0 + nrm(ks[8], (1, d_model), 0.02),
            ln1_b=nrm(ks[9], (1, d_model), 0.02),
            ln2_g=1.0 + nrm(ks[10], (1, d_model), 0.02),
            ln2_b=nrm(ks[11], (1, d_model), 0.02),
            w1=nrm(ks[12], (d_model, d_ff)),
            b1=nrm(ks[13], (1, d_ff), 0.02),
            w2=nrm(ks[14], (d_ff, d_model)),
            b2=nrm(ks[15], (1, d_model), 0.02),
        ))
    kl = jax.random.split(jax.random.fold_in(key, n_layers), 2)
    return dict(layers=layers,
                last_ln_g=1.0 + nrm(kl[0], (1, d_model), 0.02),
                last_ln_b=nrm(kl[1], (1, d_model), 0.02))


if __name__ == "__main__":
    B, S, D = 4, 8, 32
    n_layers, n_heads, d_ff = 2, 2, 32

    key = jax.random.PRNGKey(0)
    kp, kx, kpos, kneg = jax.random.split(key, 4)
    params = init_params(kp, n_layers, n_heads, D, d_ff)

    x_embed = jax.random.normal(kx, (B, S, D), jnp.float32)
    pos_embed = jax.random.normal(kpos, (B, S, D), jnp.float32)
    neg_embed = jax.random.normal(kneg, (B, S, D), jnp.float32)
    # right-padding: sequence lengths -> 1 marks padded positions
    lengths = jnp.array([8, 5, 3, 7])
    padding_mask = (jnp.arange(S)[None, :] >= lengths[:, None]).astype(jnp.float32)

    fwd = jax.jit(functools.partial(sas_forward, n_heads=n_heads))
    pos_logits, neg_logits, embed = fwd(params, x_embed, pos_embed, neg_embed,
                                        padding_mask)
    jax.block_until_ready((pos_logits, neg_logits, embed))

    pos_ref, neg_ref, embed_ref = sas_reference(params, x_embed, pos_embed,
                                                neg_embed, padding_mask, n_heads)
    assert pos_logits.shape == (B, S) and neg_logits.shape == (B, S)
    assert embed.shape == (B, S, D)
    assert bool(jnp.all(jnp.isfinite(embed)))
    # 2e-2 tolerance: bf16 weight matmuls + approx softmax reciprocal vs the
    # f32 HIGHEST-precision reference.
    assert jnp.allclose(embed, embed_ref, rtol=2e-2, atol=2e-2)
    assert jnp.allclose(pos_logits, pos_ref, rtol=2e-2, atol=2e-2)
    assert jnp.allclose(neg_logits, neg_ref, rtol=2e-2, atol=2e-2)

    print("KERNEL_OK")
</pallas_src>

<mosaic_0001>
module attributes {stable_mosaic.version = 11 : i64} {
  func.func @sas_fused_kernel(%arg0: i32, %arg1: i32, %arg2: memref<2x1x8xf32, #tpu.memory_space<vmem>>, %arg3: memref<16x1xf32, #tpu.memory_space<vmem>>, %arg4: memref<2x8x32xf32, #tpu.memory_space<vmem>>, %arg5: memref<1x32x32xbf16, #tpu.memory_space<vmem>>, %arg6: memref<1x32x32xbf16, #tpu.memory_space<vmem>>, %arg7: memref<1x32x32xbf16, #tpu.memory_space<vmem>>, %arg8: memref<1x32x32xbf16, #tpu.memory_space<vmem>>, %arg9: memref<1x1x32xf32, #tpu.memory_space<vmem>>, %arg10: memref<1x1x32xf32, #tpu.memory_space<vmem>>, %arg11: memref<1x1x32xf32, #tpu.memory_space<vmem>>, %arg12: memref<1x1x32xf32, #tpu.memory_space<vmem>>, %arg13: memref<1x1x32xf32, #tpu.memory_space<vmem>>, %arg14: memref<1x1x32xf32, #tpu.memory_space<vmem>>, %arg15: memref<1x1x32xf32, #tpu.memory_space<vmem>>, %arg16: memref<1x1x32xf32, #tpu.memory_space<vmem>>, %arg17: memref<1x32x32xbf16, #tpu.memory_space<vmem>>, %arg18: memref<1x1x32xf32, #tpu.memory_space<vmem>>, %arg19: memref<1x32x32xbf16, #tpu.memory_space<vmem>>, %arg20: memref<1x1x32xf32, #tpu.memory_space<vmem>>, %arg21: memref<1x32xf32, #tpu.memory_space<vmem>>, %arg22: memref<1x32xf32, #tpu.memory_space<vmem>>, %arg23: memref<2x8x32xf32, #tpu.memory_space<vmem>>, %arg24: memref<16x32xf32, #tpu.memory_space<vmem>>, %arg25: memref<2x8x8xf32, #tpu.memory_space<vmem>>, %arg26: memref<16x32xf32, #tpu.memory_space<vmem>>) attributes {dimension_semantics = [#tpu.dimension_semantics<parallel>, #tpu.dimension_semantics<arbitrary>], iteration_bounds = array<i64: 2, 2>, scalar_prefetch = 0 : i64, scratch_operands = 3 : i64, tpu.core_type = #tpu.core_type<tc>, window_params = [{transform_indices = @transform_0, window_bounds = array<i64: 2, 1, 8>}, {transform_indices = @transform_1, window_bounds = array<i64: 16, 1>}, {transform_indices = @transform_2, window_bounds = array<i64: 2, 8, 32>}, {transform_indices = @transform_3, window_bounds = array<i64: 1, 32, 32>}, {transform_indices = @transform_4, window_bounds = array<i64: 1, 32, 32>}, {transform_indices = @transform_5, window_bounds = array<i64: 1, 32, 32>}, {transform_indices = @transform_6, window_bounds = array<i64: 1, 32, 32>}, {transform_indices = @transform_7, window_bounds = array<i64: 1, 1, 32>}, {transform_indices = @transform_8, window_bounds = array<i64: 1, 1, 32>}, {transform_indices = @transform_9, window_bounds = array<i64: 1, 1, 32>}, {transform_indices = @transform_10, window_bounds = array<i64: 1, 1, 32>}, {transform_indices = @transform_11, window_bounds = array<i64: 1, 1, 32>}, {transform_indices = @transform_12, window_bounds = array<i64: 1, 1, 32>}, {transform_indices = @transform_13, window_bounds = array<i64: 1, 1, 32>}, {transform_indices = @transform_14, window_bounds = array<i64: 1, 1, 32>}, {transform_indices = @transform_15, window_bounds = array<i64: 1, 32, 32>}, {transform_indices = @transform_16, window_bounds = array<i64: 1, 1, 32>}, {transform_indices = @transform_17, window_bounds = array<i64: 1, 32, 32>}, {transform_indices = @transform_18, window_bounds = array<i64: 1, 1, 32>}, {pipeline_mode = #tpu.pipeline_mode<synchronous>, transform_indices = @transform_19, window_bounds = array<i64: 1, 32>}, {pipeline_mode = #tpu.pipeline_mode<synchronous>, transform_indices = @transform_20, window_bounds = array<i64: 1, 32>}, {transform_indices = @transform_21, window_bounds = array<i64: 2, 8, 32>}]} {
    %c0_i32 = arith.constant 0 : i32
    %0 = arith.cmpi eq, %arg1, %c0_i32 : i32
    %1 = arith.extui %0 : i1 to i32
    %c0_i32_0 = arith.constant 0 : i32
    %2 = arith.cmpi ne, %1, %c0_i32_0 : i32
    scf.if %2 {
      %c0_104 = arith.constant 0 : index
      %c0_105 = arith.constant 0 : index
      %c0_106 = arith.constant 0 : index
      %200 = vector.load %arg4[%c0_104, %c0_105, %c0_106] : memref<2x8x32xf32, #tpu.memory_space<vmem>>, vector<2x8x32xf32>
      %201 = vector.shape_cast %200 : vector<2x8x32xf32> to vector<16x32xf32>
      %c0_107 = arith.constant 0 : index
      %c0_108 = arith.constant 0 : index
      %202 = vector.load %arg24[%c0_107, %c0_108] : memref<16x32xf32, #tpu.memory_space<vmem>>, vector<16x32xf32>
      tpu.vector_store %arg24[%c0_107, %c0_108], %201 {strides = array<i32>} : memref<16x32xf32, #tpu.memory_space<vmem>>, vector<16x32xf32>,
      %203 = tpu.iota {dimensions = array<i32: 1>} : vector<2x8x8xi32>
      %204 = tpu.iota {dimensions = array<i32: 2>} : vector<2x8x8xi32>
      %205 = arith.cmpi sle, %204, %203 : vector<2x8x8xi32>
      %c0_109 = arith.constant 0 : index
      %c0_110 = arith.constant 0 : index
      %c0_111 = arith.constant 0 : index
      %206 = vector.load %arg2[%c0_109, %c0_110, %c0_111] : memref<2x1x8xf32, #tpu.memory_space<vmem>>, vector<2x1x8xf32>
      %cst_112 = arith.constant 5.000000e-01 : f32
      %207 = vector.broadcast %cst_112 : f32 to vector<2x1x8xf32>
      %208 = arith.cmpf ogt, %206, %207 : vector<2x1x8xf32>
      %209 = vector.broadcast %208 : vector<2x1x8xi1> to vector<2x8x8xi1>
      %210 = arith.andi %205, %209 : vector<2x8x8xi1>
      %cst_113 = arith.constant 0.000000e+00 : f32
      %cst_114 = arith.constant -1.000000e+30 : f32
      %211 = vector.broadcast %cst_113 : f32 to vector<2x8x8xf32>
      %212 = vector.broadcast %cst_114 : f32 to vector<2x8x8xf32>
      %213 = arith.select %210, %211, %212 : vector<2x8x8xi1>, vector<2x8x8xf32>
      %c0_115 = arith.constant 0 : index
      %c0_116 = arith.constant 0 : index
      %c0_117 = arith.constant 0 : index
      %214 = vector.load %arg25[%c0_115, %c0_116, %c0_117] : memref<2x8x8xf32, #tpu.memory_space<vmem>>, vector<2x8x8xf32>
      tpu.vector_store %arg25[%c0_115, %c0_116, %c0_117], %213 {strides = array<i32>} : memref<2x8x8xf32, #tpu.memory_space<vmem>>, vector<2x8x8xf32>,
    } else {
    }
    %c0 = arith.constant 0 : index
    %c0_1 = arith.constant 0 : index
    %3 = vector.load %arg24[%c0, %c0_1] : memref<16x32xf32, #tpu.memory_space<vmem>>, vector<16x32xf32>
    %c0_2 = arith.constant 0 : index
    %c0_3 = arith.constant 0 : index
    %4 = vector.load %arg3[%c0_2, %c0_3] : memref<16x1xf32, #tpu.memory_space<vmem>>, vector<16x1xf32>
    %c0_4 = arith.constant 0 : index
    %c0_5 = arith.constant 0 : index
    %c0_6 = arith.constant 0 : index
    %5 = vector.load %arg13[%c0_4, %c0_5, %c0_6] : memref<1x1x32xf32, #tpu.memory_space<vmem>>, vector<1x1x32xf32>
    %6 = vector.shape_cast %5 : vector<1x1x32xf32> to vector<1x32xf32>
    %c0_7 = arith.constant 0 : index
    %c0_8 = arith.constant 0 : index
    %c0_9 = arith.constant 0 : index
    %7 = vector.load %arg14[%c0_7, %c0_8, %c0_9] : memref<1x1x32xf32, #tpu.memory_space<vmem>>, vector<1x1x32xf32>
    %8 = vector.shape_cast %7 : vector<1x1x32xf32> to vector<1x32xf32>
    %cst = arith.constant dense<0.000000e+00> : vector<16xf32>
    %9 = vector.multi_reduction <add>, %3, %cst [1] : vector<16x32xf32> to vector<16xf32>
    %10 = vector.shape_cast %9 : vector<16xf32> to vector<16x1xf32>
    %cst_10 = arith.constant 3.200000e+01 : f32
    %11 = vector.broadcast %cst_10 : f32 to vector<16x1xf32>
    %12 = arith.divf %10, %11 : vector<16x1xf32>
    %13 = vector.broadcast %12 : vector<16x1xf32> to vector<16x32xf32>
    %14 = arith.subf %3, %13 : vector<16x32xf32>
    %15 = arith.mulf %14, %14 : vector<16x32xf32>
    %cst_11 = arith.constant dense<0.000000e+00> : vector<16xf32>
    %16 = vector.multi_reduction <add>, %15, %cst_11 [1] : vector<16x32xf32> to vector<16xf32>
    %17 = vector.shape_cast %16 : vector<16xf32> to vector<16x1xf32>
    %cst_12 = arith.constant 3.200000e+01 : f32
    %18 = vector.broadcast %cst_12 : f32 to vector<16x1xf32>
    %19 = arith.divf %17, %18 : vector<16x1xf32>
    %cst_13 = arith.constant 9.99999974E-6 : f32
    %20 = vector.broadcast %cst_13 : f32 to vector<16x1xf32>
    %21 = arith.addf %19, %20 : vector<16x1xf32>
    %22 = math.rsqrt %21 : vector<16x1xf32>
    %23 = vector.broadcast %22 : vector<16x1xf32> to vector<16x32xf32>
    %24 = arith.mulf %14, %23 : vector<16x32xf32>
    %25 = vector.broadcast %6 : vector<1x32xf32> to vector<16x32xf32>
    %26 = arith.mulf %24, %25 : vector<16x32xf32>
    %27 = vector.broadcast %8 : vector<1x32xf32> to vector<16x32xf32>
    %28 = arith.addf %26, %27 : vector<16x32xf32>
    %29 = arith.truncf %28 : vector<16x32xf32> to vector<16x32xbf16>
    %c0_14 = arith.constant 0 : index
    %c0_15 = arith.constant 0 : index
    %c0_16 = arith.constant 0 : index
    %30 = vector.load %arg5[%c0_14, %c0_15, %c0_16] : memref<1x32x32xbf16, #tpu.memory_space<vmem>>, vector<1x32x32xbf16>
    %31 = vector.shape_cast %30 : vector<1x32x32xbf16> to vector<32x32xbf16>
    %cst_17 = arith.constant dense<0.000000e+00> : vector<16x32xf32>
    %32 = tpu.matmul %29, %31, %cst_17 {dimension_numbers = #tpu.dot_dimension_numbers<[1], [0], [0], [1], [0, 0, 1, 1], [], []>} : vector<16x32xbf16>, vector<32x32xbf16>, vector<16x32xf32> -> vector<16x32xf32>
    %c0_18 = arith.constant 0 : index
    %c0_19 = arith.constant 0 : index
    %c0_20 = arith.constant 0 : index
    %33 = vector.load %arg9[%c0_18, %c0_19, %c0_20] : memref<1x1x32xf32, #tpu.memory_space<vmem>>, vector<1x1x32xf32>
    %34 = vector.shape_cast %33 : vector<1x1x32xf32> to vector<1x32xf32>
    %35 = vector.broadcast %34 : vector<1x32xf32> to vector<16x32xf32>
    %36 = arith.addf %32, %35 : vector<16x32xf32>
    %37 = arith.truncf %3 : vector<16x32xf32> to vector<16x32xbf16>
    %c0_21 = arith.constant 0 : index
    %c0_22 = arith.constant 0 : index
    %c0_23 = arith.constant 0 : index
    %38 = vector.load %arg6[%c0_21, %c0_22, %c0_23] : memref<1x32x32xbf16, #tpu.memory_space<vmem>>, vector<1x32x32xbf16>
    %39 = vector.shape_cast %38 : vector<1x32x32xbf16> to vector<32x32xbf16>
    %cst_24 = arith.constant dense<0.000000e+00> : vector<16x32xf32>
    %40 = tpu.matmul %37, %39, %cst_24 {dimension_numbers = #tpu.dot_dimension_numbers<[1], [0], [0], [1], [0, 0, 1, 1], [], []>} : vector<16x32xbf16>, vector<32x32xbf16>, vector<16x32xf32> -> vector<16x32xf32>
    %c0_25 = arith.constant 0 : index
    %c0_26 = arith.constant 0 : index
    %c0_27 = arith.constant 0 : index
    %41 = vector.load %arg10[%c0_25, %c0_26, %c0_27] : memref<1x1x32xf32, #tpu.memory_space<vmem>>, vector<1x1x32xf32>
    %42 = vector.shape_cast %41 : vector<1x1x32xf32> to vector<1x32xf32>
    %43 = vector.broadcast %42 : vector<1x32xf32> to vector<16x32xf32>
    %44 = arith.addf %40, %43 : vector<16x32xf32>
    %45 = arith.truncf %3 : vector<16x32xf32> to vector<16x32xbf16>
    %c0_28 = arith.constant 0 : index
    %c0_29 = arith.constant 0 : index
    %c0_30 = arith.constant 0 : index
    %46 = vector.load %arg7[%c0_28, %c0_29, %c0_30] : memref<1x32x32xbf16, #tpu.memory_space<vmem>>, vector<1x32x32xbf16>
    %47 = vector.shape_cast %46 : vector<1x32x32xbf16> to vector<32x32xbf16>
    %cst_31 = arith.constant dense<0.000000e+00> : vector<16x32xf32>
    %48 = tpu.matmul %45, %47, %cst_31 {dimension_numbers = #tpu.dot_dimension_numbers<[1], [0], [0], [1], [0, 0, 1, 1], [], []>} : vector<16x32xbf16>, vector<32x32xbf16>, vector<16x32xf32> -> vector<16x32xf32>
    %c0_32 = arith.constant 0 : index
    %c0_33 = arith.constant 0 : index
    %c0_34 = arith.constant 0 : index
    %49 = vector.load %arg11[%c0_32, %c0_33, %c0_34] : memref<1x1x32xf32, #tpu.memory_space<vmem>>, vector<1x1x32xf32>
    %50 = vector.shape_cast %49 : vector<1x1x32xf32> to vector<1x32xf32>
    %51 = vector.broadcast %50 : vector<1x32xf32> to vector<16x32xf32>
    %52 = arith.addf %48, %51 : vector<16x32xf32>
    %53 = vector.extract_strided_slice %36 {offsets = [0, 0], sizes = [8, 32], strides = [1, 1]} : vector<16x32xf32> to vector<8x32xf32>
    %54 = vector.extract_strided_slice %44 {offsets = [0, 0], sizes = [8, 32], strides = [1, 1]} : vector<16x32xf32> to vector<8x32xf32>
    %55 = tpu.transpose %54, [1, 0] : vector<8x32xf32> -> vector<32x8xf32>
    %56 = vector.extract_strided_slice %52 {offsets = [0, 0], sizes = [8, 32], strides = [1, 1]} : vector<16x32xf32> to vector<8x32xf32>
    %c0_35 = arith.constant 0 : index
    %c0_36 = arith.constant 0 : index
    %c0_37 = arith.constant 0 : index
    %57 = vector.load %arg25[%c0_35, %c0_36, %c0_37] : memref<2x8x8xf32, #tpu.memory_space<vmem>>, vector<1x8x8xf32>
    %58 = vector.shape_cast %57 : vector<1x8x8xf32> to vector<8x8xf32>
    %59 = vector.extract_strided_slice %53 {offsets = [0, 0], sizes = [8, 16], strides = [1, 1]} : vector<8x32xf32> to vector<8x16xf32>
    %60 = vector.extract_strided_slice %55 {offsets = [0, 0], sizes = [16, 8], strides = [1, 1]} : vector<32x8xf32> to vector<16x8xf32>
    %cst_38 = arith.constant dense<0.000000e+00> : vector<8x8xf32>
    %61 = tpu.matmul %59, %60, %cst_38 {dimension_numbers = #tpu.dot_dimension_numbers<[1], [0], [0], [1], [0, 0, 1, 1], [], []>} : vector<8x16xf32>, vector<16x8xf32>, vector<8x8xf32> -> vector<8x8xf32>
    %cst_39 = arith.constant 2.500000e-01 : f32
    %62 = vector.broadcast %cst_39 : f32 to vector<8x8xf32>
    %63 = arith.mulf %61, %62 : vector<8x8xf32>
    %64 = arith.addf %63, %58 : vector<8x8xf32>
    %cst_40 = arith.constant dense<0xFF800000> : vector<8xf32>
    %65 = vector.multi_reduction <maximumf>, %64, %cst_40 [1] : vector<8x8xf32> to vector<8xf32>
    %66 = vector.shape_cast %65 : vector<8xf32> to vector<8x1xf32>
    %67 = vector.broadcast %66 : vector<8x1xf32> to vector<8x8xf32>
    %68 = arith.subf %64, %67 : vector<8x8xf32>
    %69 = math.exp %68 : vector<8x8xf32>
    %cst_41 = arith.constant dense<0.000000e+00> : vector<8xf32>
    %70 = vector.multi_reduction <add>, %69, %cst_41 [1] : vector<8x8xf32> to vector<8xf32>
    %71 = vector.shape_cast %70 : vector<8xf32> to vector<8x1xf32>
    %72 = tpu.reciprocal %71 {approx = true} : vector<8x1xf32> -> vector<8x1xf32>
    %73 = vector.broadcast %72 : vector<8x1xf32> to vector<8x8xf32>
    %74 = arith.mulf %69, %73 : vector<8x8xf32>
    %75 = vector.extract_strided_slice %56 {offsets = [0, 0], sizes = [8, 16], strides = [1, 1]} : vector<8x32xf32> to vector<8x16xf32>
    %cst_42 = arith.constant dense<0.000000e+00> : vector<8x16xf32>
    %76 = tpu.matmul %74, %75, %cst_42 {dimension_numbers = #tpu.dot_dimension_numbers<[1], [0], [0], [1], [0, 0, 1, 1], [], []>} : vector<8x8xf32>, vector<8x16xf32>, vector<8x16xf32> -> vector<8x16xf32>
    %c0_43 = arith.constant 0 : index
    %c0_44 = arith.constant 0 : index
    %77 = vector.load %arg26[%c0_43, %c0_44] : memref<16x32xf32, #tpu.memory_space<vmem>>, vector<8x16xf32>
    tpu.vector_store %arg26[%c0_43, %c0_44], %76 {strides = array<i32>} : memref<16x32xf32, #tpu.memory_space<vmem>>, vector<8x16xf32>,
    %78 = vector.extract_strided_slice %53 {offsets = [0, 16], sizes = [8, 16], strides = [1, 1]} : vector<8x32xf32> to vector<8x16xf32>
    %79 = vector.extract_strided_slice %55 {offsets = [16, 0], sizes = [16, 8], strides = [1, 1]} : vector<32x8xf32> to vector<16x8xf32>
    %cst_45 = arith.constant dense<0.000000e+00> : vector<8x8xf32>
    %80 = tpu.matmul %78, %79, %cst_45 {dimension_numbers = #tpu.dot_dimension_numbers<[1], [0], [0], [1], [0, 0, 1, 1], [], []>} : vector<8x16xf32>, vector<16x8xf32>, vector<8x8xf32> -> vector<8x8xf32>
    %cst_46 = arith.constant 2.500000e-01 : f32
    %81 = vector.broadcast %cst_46 : f32 to vector<8x8xf32>
    %82 = arith.mulf %80, %81 : vector<8x8xf32>
    %83 = arith.addf %82, %58 : vector<8x8xf32>
    %cst_47 = arith.constant dense<0xFF800000> : vector<8xf32>
    %84 = vector.multi_reduction <maximumf>, %83, %cst_47 [1] : vector<8x8xf32> to vector<8xf32>
    %85 = vector.shape_cast %84 : vector<8xf32> to vector<8x1xf32>
    %86 = vector.broadcast %85 : vector<8x1xf32> to vector<8x8xf32>
    %87 = arith.subf %83, %86 : vector<8x8xf32>
    %88 = math.exp %87 : vector<8x8xf32>
    %cst_48 = arith.constant dense<0.000000e+00> : vector<8xf32>
    %89 = vector.multi_reduction <add>, %88, %cst_48 [1] : vector<8x8xf32> to vector<8xf32>
    %90 = vector.shape_cast %89 : vector<8xf32> to vector<8x1xf32>
    %91 = tpu.reciprocal %90 {approx = true} : vector<8x1xf32> -> vector<8x1xf32>
    %92 = vector.broadcast %91 : vector<8x1xf32> to vector<8x8xf32>
    %93 = arith.mulf %88, %92 : vector<8x8xf32>
    %94 = vector.extract_strided_slice %56 {offsets = [0, 16], sizes = [8, 16], strides = [1, 1]} : vector<8x32xf32> to vector<8x16xf32>
    %cst_49 = arith.constant dense<0.000000e+00> : vector<8x16xf32>
    %95 = tpu.matmul %93, %94, %cst_49 {dimension_numbers = #tpu.dot_dimension_numbers<[1], [0], [0], [1], [0, 0, 1, 1], [], []>} : vector<8x8xf32>, vector<8x16xf32>, vector<8x16xf32> -> vector<8x16xf32>
    %c0_50 = arith.constant 0 : index
    %c16 = arith.constant 16 : index
    %96 = vector.load %arg26[%c0_50, %c16] : memref<16x32xf32, #tpu.memory_space<vmem>>, vector<8x16xf32>
    tpu.vector_store %arg26[%c0_50, %c16], %95 {strides = array<i32>} : memref<16x32xf32, #tpu.memory_space<vmem>>, vector<8x16xf32>,
    %97 = vector.extract_strided_slice %36 {offsets = [8, 0], sizes = [8, 32], strides = [1, 1]} : vector<16x32xf32> to vector<8x32xf32>
    %98 = vector.extract_strided_slice %44 {offsets = [8, 0], sizes = [8, 32], strides = [1, 1]} : vector<16x32xf32> to vector<8x32xf32>
    %99 = tpu.transpose %98, [1, 0] : vector<8x32xf32> -> vector<32x8xf32>
    %100 = vector.extract_strided_slice %52 {offsets = [8, 0], sizes = [8, 32], strides = [1, 1]} : vector<16x32xf32> to vector<8x32xf32>
    %c1 = arith.constant 1 : index
    %c0_51 = arith.constant 0 : index
    %c0_52 = arith.constant 0 : index
    %101 = vector.load %arg25[%c1, %c0_51, %c0_52] : memref<2x8x8xf32, #tpu.memory_space<vmem>>, vector<1x8x8xf32>
    %102 = vector.shape_cast %101 : vector<1x8x8xf32> to vector<8x8xf32>
    %103 = vector.extract_strided_slice %97 {offsets = [0, 0], sizes = [8, 16], strides = [1, 1]} : vector<8x32xf32> to vector<8x16xf32>
    %104 = vector.extract_strided_slice %99 {offsets = [0, 0], sizes = [16, 8], strides = [1, 1]} : vector<32x8xf32> to vector<16x8xf32>
    %cst_53 = arith.constant dense<0.000000e+00> : vector<8x8xf32>
    %105 = tpu.matmul %103, %104, %cst_53 {dimension_numbers = #tpu.dot_dimension_numbers<[1], [0], [0], [1], [0, 0, 1, 1], [], []>} : vector<8x16xf32>, vector<16x8xf32>, vector<8x8xf32> -> vector<8x8xf32>
    %cst_54 = arith.constant 2.500000e-01 : f32
    %106 = vector.broadcast %cst_54 : f32 to vector<8x8xf32>
    %107 = arith.mulf %105, %106 : vector<8x8xf32>
    %108 = arith.addf %107, %102 : vector<8x8xf32>
    %cst_55 = arith.constant dense<0xFF800000> : vector<8xf32>
    %109 = vector.multi_reduction <maximumf>, %108, %cst_55 [1] : vector<8x8xf32> to vector<8xf32>
    %110 = vector.shape_cast %109 : vector<8xf32> to vector<8x1xf32>
    %111 = vector.broadcast %110 : vector<8x1xf32> to vector<8x8xf32>
    %112 = arith.subf %108, %111 : vector<8x8xf32>
    %113 = math.exp %112 : vector<8x8xf32>
    %cst_56 = arith.constant dense<0.000000e+00> : vector<8xf32>
    %114 = vector.multi_reduction <add>, %113, %cst_56 [1] : vector<8x8xf32> to vector<8xf32>
    %115 = vector.shape_cast %114 : vector<8xf32> to vector<8x1xf32>
    %116 = tpu.reciprocal %115 {approx = true} : vector<8x1xf32> -> vector<8x1xf32>
    %117 = vector.broadcast %116 : vector<8x1xf32> to vector<8x8xf32>
    %118 = arith.mulf %113, %117 : vector<8x8xf32>
    %119 = vector.extract_strided_slice %100 {offsets = [0, 0], sizes = [8, 16], strides = [1, 1]} : vector<8x32xf32> to vector<8x16xf32>
    %cst_57 = arith.constant dense<0.000000e+00> : vector<8x16xf32>
    %120 = tpu.matmul %118, %119, %cst_57 {dimension_numbers = #tpu.dot_dimension_numbers<[1], [0], [0], [1], [0, 0, 1, 1], [], []>} : vector<8x8xf32>, vector<8x16xf32>, vector<8x16xf32> -> vector<8x16xf32>
    %c8 = arith.constant 8 : index
    %c0_58 = arith.constant 0 : index
    %121 = vector.load %arg26[%c8, %c0_58] : memref<16x32xf32, #tpu.memory_space<vmem>>, vector<8x16xf32>
    tpu.vector_store %arg26[%c8, %c0_58], %120 {strides = array<i32>} : memref<16x32xf32, #tpu.memory_space<vmem>>, vector<8x16xf32>,
    %122 = vector.extract_strided_slice %97 {offsets = [0, 16], sizes = [8, 16], strides = [1, 1]} : vector<8x32xf32> to vector<8x16xf32>
    %123 = vector.extract_strided_slice %99 {offsets = [16, 0], sizes = [16, 8], strides = [1, 1]} : vector<32x8xf32> to vector<16x8xf32>
    %cst_59 = arith.constant dense<0.000000e+00> : vector<8x8xf32>
    %124 = tpu.matmul %122, %123, %cst_59 {dimension_numbers = #tpu.dot_dimension_numbers<[1], [0], [0], [1], [0, 0, 1, 1], [], []>} : vector<8x16xf32>, vector<16x8xf32>, vector<8x8xf32> -> vector<8x8xf32>
    %cst_60 = arith.constant 2.500000e-01 : f32
    %125 = vector.broadcast %cst_60 : f32 to vector<8x8xf32>
    %126 = arith.mulf %124, %125 : vector<8x8xf32>
    %127 = arith.addf %126, %102 : vector<8x8xf32>
    %cst_61 = arith.constant dense<0xFF800000> : vector<8xf32>
    %128 = vector.multi_reduction <maximumf>, %127, %cst_61 [1] : vector<8x8xf32> to vector<8xf32>
    %129 = vector.shape_cast %128 : vector<8xf32> to vector<8x1xf32>
    %130 = vector.broadcast %129 : vector<8x1xf32> to vector<8x8xf32>
    %131 = arith.subf %127, %130 : vector<8x8xf32>
    %132 = math.exp %131 : vector<8x8xf32>
    %cst_62 = arith.constant dense<0.000000e+00> : vector<8xf32>
    %133 = vector.multi_reduction <add>, %132, %cst_62 [1] : vector<8x8xf32> to vector<8xf32>
    %134 = vector.shape_cast %133 : vector<8xf32> to vector<8x1xf32>
    %135 = tpu.reciprocal %134 {approx = true} : vector<8x1xf32> -> vector<8x1xf32>
    %136 = vector.broadcast %135 : vector<8x1xf32> to vector<8x8xf32>
    %137 = arith.mulf %132, %136 : vector<8x8xf32>
    %138 = vector.extract_strided_slice %100 {offsets = [0, 16], sizes = [8, 16], strides = [1, 1]} : vector<8x32xf32> to vector<8x16xf32>
    %cst_63 = arith.constant dense<0.000000e+00> : vector<8x16xf32>
    %139 = tpu.matmul %137, %138, %cst_63 {dimension_numbers = #tpu.dot_dimension_numbers<[1], [0], [0], [1], [0, 0, 1, 1], [], []>} : vector<8x8xf32>, vector<8x16xf32>, vector<8x16xf32> -> vector<8x16xf32>
    %c8_64 = arith.constant 8 : index
    %c16_65 = arith.constant 16 : index
    %140 = vector.load %arg26[%c8_64, %c16_65] : memref<16x32xf32, #tpu.memory_space<vmem>>, vector<8x16xf32>
    tpu.vector_store %arg26[%c8_64, %c16_65], %139 {strides = array<i32>} : memref<16x32xf32, #tpu.memory_space<vmem>>, vector<8x16xf32>,
    %c0_66 = arith.constant 0 : index
    %c0_67 = arith.constant 0 : index
    %141 = vector.load %arg26[%c0_66, %c0_67] : memref<16x32xf32, #tpu.memory_space<vmem>>, vector<16x32xf32>
    %142 = arith.truncf %141 : vector<16x32xf32> to vector<16x32xbf16>
    %c0_68 = arith.constant 0 : index
    %c0_69 = arith.constant 0 : index
    %c0_70 = arith.constant 0 : index
    %143 = vector.load %arg8[%c0_68, %c0_69, %c0_70] : memref<1x32x32xbf16, #tpu.memory_space<vmem>>, vector<1x32x32xbf16>
    %144 = vector.shape_cast %143 : vector<1x32x32xbf16> to vector<32x32xbf16>
    %cst_71 = arith.constant dense<0.000000e+00> : vector<16x32xf32>
    %145 = tpu.matmul %142, %144, %cst_71 {dimension_numbers = #tpu.dot_dimension_numbers<[1], [0], [0], [1], [0, 0, 1, 1], [], []>} : vector<16x32xbf16>, vector<32x32xbf16>, vector<16x32xf32> -> vector<16x32xf32>
    %c0_72 = arith.constant 0 : index
    %c0_73 = arith.constant 0 : index
    %c0_74 = arith.constant 0 : index
    %146 = vector.load %arg12[%c0_72, %c0_73, %c0_74] : memref<1x1x32xf32, #tpu.memory_space<vmem>>, vector<1x1x32xf32>
    %147 = vector.shape_cast %146 : vector<1x1x32xf32> to vector<1x32xf32>
    %148 = vector.broadcast %147 : vector<1x32xf32> to vector<16x32xf32>
    %149 = arith.addf %145, %148 : vector<16x32xf32>
    %150 = arith.addf %28, %149 : vector<16x32xf32>
    %c0_75 = arith.constant 0 : index
    %c0_76 = arith.constant 0 : index
    %c0_77 = arith.constant 0 : index
    %151 = vector.load %arg15[%c0_75, %c0_76, %c0_77] : memref<1x1x32xf32, #tpu.memory_space<vmem>>, vector<1x1x32xf32>
    %152 = vector.shape_cast %151 : vector<1x1x32xf32> to vector<1x32xf32>
    %c0_78 = arith.constant 0 : index
    %c0_79 = arith.constant 0 : index
    %c0_80 = arith.constant 0 : index
    %153 = vector.load %arg16[%c0_78, %c0_79, %c0_80] : memref<1x1x32xf32, #tpu.memory_space<vmem>>, vector<1x1x32xf32>
    %154 = vector.shape_cast %153 : vector<1x1x32xf32> to vector<1x32xf32>
    %cst_81 = arith.constant dense<0.000000e+00> : vector<16xf32>
    %155 = vector.multi_reduction <add>, %150, %cst_81 [1] : vector<16x32xf32> to vector<16xf32>
    %156 = vector.shape_cast %155 : vector<16xf32> to vector<16x1xf32>
    %cst_82 = arith.constant 3.200000e+01 : f32
    %157 = vector.broadcast %cst_82 : f32 to vector<16x1xf32>
    %158 = arith.divf %156, %157 : vector<16x1xf32>
    %159 = vector.broadcast %158 : vector<16x1xf32> to vector<16x32xf32>
    %160 = arith.subf %150, %159 : vector<16x32xf32>
    %161 = arith.mulf %160, %160 : vector<16x32xf32>
    %cst_83 = arith.constant dense<0.000000e+00> : vector<16xf32>
    %162 = vector.multi_reduction <add>, %161, %cst_83 [1] : vector<16x32xf32> to vector<16xf32>
    %163 = vector.shape_cast %162 : vector<16xf32> to vector<16x1xf32>
    %cst_84 = arith.constant 3.200000e+01 : f32
    %164 = vector.broadcast %cst_84 : f32 to vector<16x1xf32>
    %165 = arith.divf %163, %164 : vector<16x1xf32>
    %cst_85 = arith.constant 9.99999974E-6 : f32
    %166 = vector.broadcast %cst_85 : f32 to vector<16x1xf32>
    %167 = arith.addf %165, %166 : vector<16x1xf32>
    %168 = math.rsqrt %167 : vector<16x1xf32>
    %169 = vector.broadcast %168 : vector<16x1xf32> to vector<16x32xf32>
    %170 = arith.mulf %160, %169 : vector<16x32xf32>
    %171 = vector.broadcast %152 : vector<1x32xf32> to vector<16x32xf32>
    %172 = arith.mulf %170, %171 : vector<16x32xf32>
    %173 = vector.broadcast %154 : vector<1x32xf32> to vector<16x32xf32>
    %174 = arith.addf %172, %173 : vector<16x32xf32>
    %175 = arith.truncf %174 : vector<16x32xf32> to vector<16x32xbf16>
    %c0_86 = arith.constant 0 : index
    %c0_87 = arith.constant 0 : index
    %c0_88 = arith.constant 0 : index
    %176 = vector.load %arg17[%c0_86, %c0_87, %c0_88] : memref<1x32x32xbf16, #tpu.memory_space<vmem>>, vector<1x32x32xbf16>
    %177 = vector.shape_cast %176 : vector<1x32x32xbf16> to vector<32x32xbf16>
    %cst_89 = arith.constant dense<0.000000e+00> : vector<16x32xf32>
    %178 = tpu.matmul %175, %177, %cst_89 {dimension_numbers = #tpu.dot_dimension_numbers<[1], [0], [0], [1], [0, 0, 1, 1], [], []>} : vector<16x32xbf16>, vector<32x32xbf16>, vector<16x32xf32> -> vector<16x32xf32>
    %c0_90 = arith.constant 0 : index
    %c0_91 = arith.constant 0 : index
    %c0_92 = arith.constant 0 : index
    %179 = vector.load %arg18[%c0_90, %c0_91, %c0_92] : memref<1x1x32xf32, #tpu.memory_space<vmem>>, vector<1x1x32xf32>
    %180 = vector.shape_cast %179 : vector<1x1x32xf32> to vector<1x32xf32>
    %181 = vector.broadcast %180 : vector<1x32xf32> to vector<16x32xf32>
    %182 = arith.addf %178, %181 : vector<16x32xf32>
    %cst_93 = arith.constant 0.000000e+00 : f32
    %183 = vector.broadcast %cst_93 : f32 to vector<16x32xf32>
    %184 = arith.maximumf %182, %183 : vector<16x32xf32>
    %185 = arith.truncf %184 : vector<16x32xf32> to vector<16x32xbf16>
    %c0_94 = arith.constant 0 : index
    %c0_95 = arith.constant 0 : index
    %c0_96 = arith.constant 0 : index
    %186 = vector.load %arg19[%c0_94, %c0_95, %c0_96] : memref<1x32x32xbf16, #tpu.memory_space<vmem>>, vector<1x32x32xbf16>
    %187 = vector.shape_cast %186 : vector<1x32x32xbf16> to vector<32x32xbf16>
    %cst_97 = arith.constant dense<0.000000e+00> : vector<16x32xf32>
    %188 = tpu.matmul %185, %187, %cst_97 {dimension_numbers = #tpu.dot_dimension_numbers<[1], [0], [0], [1], [0, 0, 1, 1], [], []>} : vector<16x32xbf16>, vector<32x32xbf16>, vector<16x32xf32> -> vector<16x32xf32>
    %c0_98 = arith.constant 0 : index
    %c0_99 = arith.constant 0 : index
    %c0_100 = arith.constant 0 : index
    %189 = vector.load %arg20[%c0_98, %c0_99, %c0_100] : memref<1x1x32xf32, #tpu.memory_space<vmem>>, vector<1x1x32xf32>
    %190 = vector.shape_cast %189 : vector<1x1x32xf32> to vector<1x32xf32>
    %191 = vector.broadcast %190 : vector<1x32xf32> to vector<16x32xf32>
    %192 = arith.addf %188, %191 : vector<16x32xf32>
    %193 = arith.addf %174, %192 : vector<16x32xf32>
    %194 = vector.broadcast %4 : vector<16x1xf32> to vector<16x32xf32>
    %195 = arith.mulf %193, %194 : vector<16x32xf32>
    %c0_101 = arith.constant 0 : index
    %c0_102 = arith.constant 0 : index
    %196 = vector.load %arg24[%c0_101, %c0_102] : memref<16x32xf32, #tpu.memory_space<vmem>>, vector<16x32xf32>
    tpu.vector_store %arg24[%c0_101, %c0_102], %195 {strides = array<i32>} : memref<16x32xf32, #tpu.memory_space<vmem>>, vector<16x32xf32>,
    %c1_i32 = arith.constant 1 : i32
    %197 = arith.cmpi eq, %arg1, %c1_i32 : i32
    %198 = arith.extui %197 : i1 to i32
    %c0_i32_103 = arith.constant 0 : i32
    %199 = arith.cmpi ne, %198, %c0_i32_103 : i32
    scf.if %199 {
      %c0_104 = arith.constant 0 : index
      %c0_105 = arith.constant 0 : index
      %200 = vector.load %arg21[%c0_104, %c0_105] : memref<1x32xf32, #tpu.memory_space<vmem>>, vector<1x32xf32>
      %c0_106 = arith.constant 0 : index
      %c0_107 = arith.constant 0 : index
      %201 = vector.load %arg22[%c0_106, %c0_107] : memref<1x32xf32, #tpu.memory_space<vmem>>, vector<1x32xf32>
      %cst_108 = arith.constant dense<0.000000e+00> : vector<16xf32>
      %202 = vector.multi_reduction <add>, %195, %cst_108 [1] : vector<16x32xf32> to vector<16xf32>
      %203 = vector.shape_cast %202 : vector<16xf32> to vector<16x1xf32>
      %cst_109 = arith.constant 3.200000e+01 : f32
      %204 = vector.broadcast %cst_109 : f32 to vector<16x1xf32>
      %205 = arith.divf %203, %204 : vector<16x1xf32>
      %206 = vector.broadcast %205 : vector<16x1xf32> to vector<16x32xf32>
      %207 = arith.subf %195, %206 : vector<16x32xf32>
      %208 = arith.mulf %207, %207 : vector<16x32xf32>
      %cst_110 = arith.constant dense<0.000000e+00> : vector<16xf32>
      %209 = vector.multi_reduction <add>, %208, %cst_110 [1] : vector<16x32xf32> to vector<16xf32>
      %210 = vector.shape_cast %209 : vector<16xf32> to vector<16x1xf32>
      %cst_111 = arith.constant 3.200000e+01 : f32
      %211 = vector.broadcast %cst_111 : f32 to vector<16x1xf32>
      %212 = arith.divf %210, %211 : vector<16x1xf32>
      %cst_112 = arith.constant 9.99999993E-9 : f32
      %213 = vector.broadcast %cst_112 : f32 to vector<16x1xf32>
      %214 = arith.addf %212, %213 : vector<16x1xf32>
      %215 = math.rsqrt %214 : vector<16x1xf32>
      %216 = vector.broadcast %215 : vector<16x1xf32> to vector<16x32xf32>
      %217 = arith.mulf %207, %216 : vector<16x32xf32>
      %218 = vector.broadcast %200 : vector<1x32xf32> to vector<16x32xf32>
      %219 = arith.mulf %217, %218 : vector<16x32xf32>
      %220 = vector.broadcast %201 : vector<1x32xf32> to vector<16x32xf32>
      %221 = arith.addf %219, %220 : vector<16x32xf32>
      %222 = vector.shape_cast %221 : vector<16x32xf32> to vector<2x8x32xf32>
      %c0_113 = arith.constant 0 : index
      %c0_114 = arith.constant 0 : index
      %c0_115 = arith.constant 0 : index
      %223 = vector.load %arg23[%c0_113, %c0_114, %c0_115] : memref<2x8x32xf32, #tpu.memory_space<vmem>>, vector<2x8x32xf32>
      tpu.vector_store %arg23[%c0_113, %c0_114, %c0_115], %222 {strides = array<i32>} : memref<2x8x32xf32, #tpu.memory_space<vmem>>, vector<2x8x32xf32>,
    } else {
    }
    return
  }
  func.func @transform_0(%arg0: i32, %arg1: i32) -> (i32, i32, i32) {
    %c0_i32 = arith.constant 0 : i32
    %c0_i32_0 = arith.constant 0 : i32
    %c0_i32_1 = arith.constant 0 : i32
    return %arg0, %c0_i32, %c0_i32_0 : i32, i32, i32
  }
  func.func @transform_1(%arg0: i32, %arg1: i32) -> (i32, i32) {
    %c0_i32 = arith.constant 0 : i32
    %c0_i32_0 = arith.constant 0 : i32
    return %arg0, %c0_i32 : i32, i32
  }
  func.func @transform_2(%arg0: i32, %arg1: i32) -> (i32, i32, i32) {
    %c0_i32 = arith.constant 0 : i32
    %c0_i32_0 = arith.constant 0 : i32
    %c0_i32_1 = arith.constant 0 : i32
    return %arg0, %c0_i32, %c0_i32_0 : i32, i32, i32
  }
  func.func @transform_3(%arg0: i32, %arg1: i32) -> (i32, i32, i32) {
    %c0_i32 = arith.constant 0 : i32
    %c0_i32_0 = arith.constant 0 : i32
    %c0_i32_1 = arith.constant 0 : i32
    return %arg1, %c0_i32, %c0_i32_0 : i32, i32, i32
  }
  func.func @transform_4(%arg0: i32, %arg1: i32) -> (i32, i32, i32) {
    %c0_i32 = arith.constant 0 : i32
    %c0_i32_0 = arith.constant 0 : i32
    %c0_i32_1 = arith.constant 0 : i32
    return %arg1, %c0_i32, %c0_i32_0 : i32, i32, i32
  }
  func.func @transform_5(%arg0: i32, %arg1: i32) -> (i32, i32, i32) {
    %c0_i32 = arith.constant 0 : i32
    %c0_i32_0 = arith.constant 0 : i32
    %c0_i32_1 = arith.constant 0 : i32
    return %arg1, %c0_i32, %c0_i32_0 : i32, i32, i32
  }
  func.func @transform_6(%arg0: i32, %arg1: i32) -> (i32, i32, i32) {
    %c0_i32 = arith.constant 0 : i32
    %c0_i32_0 = arith.constant 0 : i32
    %c0_i32_1 = arith.constant 0 : i32
    return %arg1, %c0_i32, %c0_i32_0 : i32, i32, i32
  }
  func.func @transform_7(%arg0: i32, %arg1: i32) -> (i32, i32, i32) {
    %c0_i32 = arith.constant 0 : i32
    %c0_i32_0 = arith.constant 0 : i32
    %c0_i32_1 = arith.constant 0 : i32
    return %arg1, %c0_i32, %c0_i32_0 : i32, i32, i32
  }
  func.func @transform_8(%arg0: i32, %arg1: i32) -> (i32, i32, i32) {
    %c0_i32 = arith.constant 0 : i32
    %c0_i32_0 = arith.constant 0 : i32
    %c0_i32_1 = arith.constant 0 : i32
    return %arg1, %c0_i32, %c0_i32_0 : i32, i32, i32
  }
  func.func @transform_9(%arg0: i32, %arg1: i32) -> (i32, i32, i32) {
    %c0_i32 = arith.constant 0 : i32
    %c0_i32_0 = arith.constant 0 : i32
    %c0_i32_1 = arith.constant 0 : i32
    return %arg1, %c0_i32, %c0_i32_0 : i32, i32, i32
  }
  func.func @transform_10(%arg0: i32, %arg1: i32) -> (i32, i32, i32) {
    %c0_i32 = arith.constant 0 : i32
    %c0_i32_0 = arith.constant 0 : i32
    %c0_i32_1 = arith.constant 0 : i32
    return %arg1, %c0_i32, %c0_i32_0 : i32, i32, i32
  }
  func.func @transform_11(%arg0: i32, %arg1: i32) -> (i32, i32, i32) {
    %c0_i32 = arith.constant 0 : i32
    %c0_i32_0 = arith.constant 0 : i32
    %c0_i32_1 = arith.constant 0 : i32
    return %arg1, %c0_i32, %c0_i32_0 : i32, i32, i32
  }
  func.func @transform_12(%arg0: i32, %arg1: i32) -> (i32, i32, i32) {
    %c0_i32 = arith.constant 0 : i32
    %c0_i32_0 = arith.constant 0 : i32
    %c0_i32_1 = arith.constant 0 : i32
    return %arg1, %c0_i32, %c0_i32_0 : i32, i32, i32
  }
  func.func @transform_13(%arg0: i32, %arg1: i32) -> (i32, i32, i32) {
    %c0_i32 = arith.constant 0 : i32
    %c0_i32_0 = arith.constant 0 : i32
    %c0_i32_1 = arith.constant 0 : i32
    return %arg1, %c0_i32, %c0_i32_0 : i32, i32, i32
  }
  func.func @transform_14(%arg0: i32, %arg1: i32) -> (i32, i32, i32) {
    %c0_i32 = arith.constant 0 : i32
    %c0_i32_0 = arith.constant 0 : i32
    %c0_i32_1 = arith.constant 0 : i32
    return %arg1, %c0_i32, %c0_i32_0 : i32, i32, i32
  }
  func.func @transform_15(%arg0: i32, %arg1: i32) -> (i32, i32, i32) {
    %c0_i32 = arith.constant 0 : i32
    %c0_i32_0 = arith.constant 0 : i32
    %c0_i32_1 = arith.constant 0 : i32
    return %arg1, %c0_i32, %c0_i32_0 : i32, i32, i32
  }
  func.func @transform_16(%arg0: i32, %arg1: i32) -> (i32, i32, i32) {
    %c0_i32 = arith.constant 0 : i32
    %c0_i32_0 = arith.constant 0 : i32
    %c0_i32_1 = arith.constant 0 : i32
    return %arg1, %c0_i32, %c0_i32_0 : i32, i32, i32
  }
  func.func @transform_17(%arg0: i32, %arg1: i32) -> (i32, i32, i32) {
    %c0_i32 = arith.constant 0 : i32
    %c0_i32_0 = arith.constant 0 : i32
    %c0_i32_1 = arith.constant 0 : i32
    return %arg1, %c0_i32, %c0_i32_0 : i32, i32, i32
  }
  func.func @transform_18(%arg0: i32, %arg1: i32) -> (i32, i32, i32) {
    %c0_i32 = arith.constant 0 : i32
    %c0_i32_0 = arith.constant 0 : i32
    %c0_i32_1 = arith.constant 0 : i32
    return %arg1, %c0_i32, %c0_i32_0 : i32, i32, i32
  }
  func.func @transform_19(%arg0: i32, %arg1: i32) -> (i32, i32) {
    %c0_i32 = arith.constant 0 : i32
    %c0_i32_0 = arith.constant 0 : i32
    %c0_i32_1 = arith.constant 0 : i32
    return %c0_i32, %c0_i32_0 : i32, i32
  }
  func.func @transform_20(%arg0: i32, %arg1: i32) -> (i32, i32) {
    %c0_i32 = arith.constant 0 : i32
    %c0_i32_0 = arith.constant 0 : i32
    %c0_i32_1 = arith.constant 0 : i32
    return %c0_i32, %c0_i32_0 : i32, i32
  }
  func.func @transform_21(%arg0: i32, %arg1: i32) -> (i32, i32, i32) {
    %c0_i32 = arith.constant 0 : i32
    %c0_i32_0 = arith.constant 0 : i32
    %c0_i32_1 = arith.constant 0 : i32
    return %arg0, %c0_i32, %c0_i32_0 : i32, i32, i32
  }
}

</mosaic_0001>

<llo_original>
// kernel: sas_forward.1
$region0: #{sas_forward.1}
  #allocation0 [shape = 'u32[]', space=smem, size = 0x4, offset = 0x4, fixed_abs, tag = 'smem constant byte address 0x4 - core index']
  #allocation1 [shape = 'u32[144,128]{1,0:T(1,128)}', space=vmem, size = 0x12000, scoped, tag = 'internal scratch']
  #allocation2 [shape = 'f32[16,32]{1,0:T(8,128)}', space=vmem, size = 0x2000, scoped, tag = 'scratch operand']
  #allocation3 [shape = 'f32[2,8,8]{2,1,0:T(8,128)}', space=vmem, size = 0x2000, scoped, tag = 'scratch operand']
  #allocation4 [shape = 'f32[16,32]{1,0:T(8,128)}', space=vmem, size = 0x2000, scoped, tag = 'scratch operand']
  %s0 = inlined_call_operand.vmem [shape: f32[4,1,8], index: 0, kind: input, shape index: {}]
  %s1 = inlined_call_operand.vmem [shape: f32[32,1], index: 1, kind: input, shape index: {}]
  %s2 = inlined_call_operand.vmem [shape: f32[4,8,32], index: 2, kind: input, shape index: {}]
  %s3 = inlined_call_operand.vmem [shape: bf16[2,32,32], index: 3, kind: input, shape index: {}]
  %s4 = inlined_call_operand.vmem [shape: bf16[2,32,32], index: 4, kind: input, shape index: {}]
  %s5 = inlined_call_operand.vmem [shape: bf16[2,32,32], index: 5, kind: input, shape index: {}]
  %s6 = inlined_call_operand.vmem [shape: bf16[2,32,32], index: 6, kind: input, shape index: {}]
  %s7 = inlined_call_operand.vmem [shape: f32[2,1,32], index: 7, kind: input, shape index: {}]
  %s8 = inlined_call_operand.vmem [shape: f32[2,1,32], index: 8, kind: input, shape index: {}]
  %s9 = inlined_call_operand.vmem [shape: f32[2,1,32], index: 9, kind: input, shape index: {}]
  %s10 = inlined_call_operand.vmem [shape: f32[2,1,32], index: 10, kind: input, shape index: {}]
  %s11 = inlined_call_operand.vmem [shape: f32[2,1,32], index: 11, kind: input, shape index: {}]
  %s12 = inlined_call_operand.vmem [shape: f32[2,1,32], index: 12, kind: input, shape index: {}]
  %s13 = inlined_call_operand.vmem [shape: f32[2,1,32], index: 13, kind: input, shape index: {}]
  %s14 = inlined_call_operand.vmem [shape: f32[2,1,32], index: 14, kind: input, shape index: {}]
  %s15 = inlined_call_operand.vmem [shape: bf16[2,32,32], index: 15, kind: input, shape index: {}]
  %s16 = inlined_call_operand.vmem [shape: f32[2,1,32], index: 16, kind: input, shape index: {}]
  %s17 = inlined_call_operand.vmem [shape: bf16[2,32,32], index: 17, kind: input, shape index: {}]
  %s18 = inlined_call_operand.vmem [shape: f32[2,1,32], index: 18, kind: input, shape index: {}]
  %s19 = inlined_call_operand.vmem [shape: f32[1,32], index: 19, kind: input, shape index: {}]
  %s20 = inlined_call_operand.vmem [shape: f32[1,32], index: 20, kind: input, shape index: {}]
  %s21 = inlined_call_operand.vmem [shape: f32[4,8,32], index: 21, kind: output, shape index: {}]
  %s22 = sld [smem:[#allocation0]]
  $region125: #{sas_forward.1} parent=0
    _
  %s24 = ssub.s32 1, %s22
  %s25 = scalar_select 0, %s24, %s22
  loop: start=0, step=1, limit=6
  $region2: #{sas_forward.1} parent=0 // loop_pre_header
    _
  $region3: #{sas_forward.1} parent=0 // loop_header
    %s27 = sphi 0, %s31
    %p28 = scmp.ge.s32.totalorder %s27, 6
    %s34 = sphi 0, %s46
    %s35 = sphi 0, %s42
    %s36 = sphi 0, %s34
    %s37 = sphi 0, %s35
    %s38 = sphi 0, %s36
    %s39 = sphi 0, %s37
    %s49 = sphi 0, %s51
    %s52 = sphi 0, %s49
    %s53 = sphi 0, %s52
    %s69 = sphi 0, %s53
    %s75 = sphi 0, %s77
    %s78 = sphi 0, %s75
    %s79 = sphi 0, %s78
    %s95 = sphi 0, %s79
    %s101 = sphi 0, %s103
    %s104 = sphi 0, %s101
    %s105 = sphi 0, %s104
    %s121 = sphi 0, %s105
    %s127 = sphi 0, %s129
    %s130 = sphi 0, %s127
    %s131 = sphi 0, %s130
    %s147 = sphi 0, %s131
    %s153 = sphi 0, %s155
    %s156 = sphi 0, %s153
    %s157 = sphi 0, %s156
    %s173 = sphi 0, %s157
    %s179 = sphi 0, %s181
    %s182 = sphi 0, %s179
    %s183 = sphi 0, %s182
    %s199 = sphi 0, %s183
    %s205 = sphi 0, %s207
    %s208 = sphi 0, %s205
    %s209 = sphi 0, %s208
    %s225 = sphi 0, %s209
    %s231 = sphi 0, %s233
    %s234 = sphi 0, %s231
    %s235 = sphi 0, %s234
    %s251 = sphi 0, %s235
    %s257 = sphi 0, %s259
    %s260 = sphi 0, %s257
    %s261 = sphi 0, %s260
    %s277 = sphi 0, %s261
    %s283 = sphi 0, %s285
    %s286 = sphi 0, %s283
    %s287 = sphi 0, %s286
    %s303 = sphi 0, %s287
    %s309 = sphi 0, %s311
    %s312 = sphi 0, %s309
    %s313 = sphi 0, %s312
    %s329 = sphi 0, %s313
    %s335 = sphi 0, %s337
    %s338 = sphi 0, %s335
    %s339 = sphi 0, %s338
    %s355 = sphi 0, %s339
    %s361 = sphi 0, %s363
    %s364 = sphi 0, %s361
    %s365 = sphi 0, %s364
    %s381 = sphi 0, %s365
    %s387 = sphi 0, %s389
    %s390 = sphi 0, %s387
    %s391 = sphi 0, %s390
    %s407 = sphi 0, %s391
    %s413 = sphi 0, %s415
    %s416 = sphi 0, %s413
    %s417 = sphi 0, %s416
    %s433 = sphi 0, %s417
    %s439 = sphi 0, %s441
    %s442 = sphi 0, %s439
    %s443 = sphi 0, %s442
    %s459 = sphi 0, %s443
    %s465 = sphi 0, %s467
    %s468 = sphi 0, %s465
    %s469 = sphi 0, %s468
    %s485 = sphi 0, %s469
    %s491 = sphi 0, %s493
    %s494 = sphi 0, %s491
    %s495 = sphi 0, %s494
    %s511 = sphi 0, %s495
    %s517 = sphi 0, %s519
    %s520 = sphi 0, %s517
    %s521 = sphi 0, %s520
    %s537 = sphi 0, %s521
    %s541 = sphi 0, %s541
    %s543 = sphi 0, %s541
    %s544 = sphi 0, %s543
    %s558 = sphi 0, %s544
    %s562 = sphi 0, %s562
    %s564 = sphi 0, %s562
    %s565 = sphi 0, %s564
    %s579 = sphi 0, %s565
    %s585 = sphi 0, %s587
    %s588 = sphi 0, %s585
    %s589 = sphi 0, %s588
    %s605 = sphi 0, %s589
  $region4: #{sas_forward.1} parent=0 // loop_header_branch
    %30 = sbr.rel (%p28) target = $region8
  $region5: #{sas_forward.1} parent=0 // loop_body
    %s32 = ssub.s32 %s27, 1
    %s33 = ssub.s32 %s27, 2
    %s40 = sadd.s32 1, %s35
    %p41 = scmp.ge.s32.totalorder %s40, 2
    %s42 = scalar_select %p41, 0, %s40
    %s43 = sadd.s32 1, %s34
    %s44 = scalar_select %p41, %s43, %s34
    %p45 = scmp.ge.s32.totalorder %s44, 2
    %s46 = scalar_select %p45, 0, %s44
    %s47 = ssub.s32 %s34, %s46
    %p48 = scmp.eq.s32.totalorder %s47, 0
    %s50 = sadd.s32 %s49, 1
    %s51 = scalar_select %p48, %s49, %s50
    %p54 = pneg %p48
    %p55 = scmp.eq.s32.totalorder %s27, 3
    %p56 = por %p54, %p55
    %p57 = scmp.ne.s32.totalorder %s49, %s52
    %p58 = scmp.eq.s32.totalorder %s27, 0
    %p59 = por %p57, %p58
    %p60 = scmp.ne.s32.totalorder %s49, %s52
    %p61 = scmp.eq.s32.totalorder %s32, 3
    %p62 = por %p60, %p61
    %p63 = scmp.ne.s32.totalorder %s52, %s53
    %p64 = scmp.eq.s32.totalorder %s32, 0
    %p65 = por %p63, %p64
    %p66 = scmp.ne.s32.totalorder %s52, %s53
    %p67 = scmp.eq.s32.totalorder %s33, 3
    %p68 = por %p66, %p67
    %p70 = scmp.ne.s32.totalorder %s53, %s69
    %p71 = scmp.eq.s32.totalorder %s33, 0
    %p72 = por %p70, %p71
    %s73 = ssub.s32 %s34, %s46
    %p74 = scmp.eq.s32.totalorder %s73, 0
    %s76 = sadd.s32 %s75, 1
    %s77 = scalar_select %p74, %s75, %s76
    %p80 = pneg %p74
    %p81 = scmp.eq.s32.totalorder %s27, 3
    %p82 = por %p80, %p81
    %p83 = scmp.ne.s32.totalorder %s75, %s78
    %p84 = scmp.eq.s32.totalorder %s27, 0
    %p85 = por %p83, %p84
    %p86 = scmp.ne.s32.totalorder %s75, %s78
    %p87 = scmp.eq.s32.totalorder %s32, 3
    %p88 = por %p86, %p87
    %p89 = scmp.ne.s32.totalorder %s78, %s79
    %p90 = scmp.eq.s32.totalorder %s32, 0
    %p91 = por %p89, %p90
    %p92 = scmp.ne.s32.totalorder %s78, %s79
    %p93 = scmp.eq.s32.totalorder %s33, 3
    %p94 = por %p92, %p93
    %p96 = scmp.ne.s32.totalorder %s79, %s95
    %p97 = scmp.eq.s32.totalorder %s33, 0
    %p98 = por %p96, %p97
    %s99 = ssub.s32 %s34, %s46
    %p100 = scmp.eq.s32.totalorder %s99, 0
    %s102 = sadd.s32 %s101, 1
    %s103 = scalar_select %p100, %s101, %s102
    %p106 = pneg %p100
    %p107 = scmp.eq.s32.totalorder %s27, 3
    %p108 = por %p106, %p107
    %p109 = scmp.ne.s32.totalorder %s101, %s104
    %p110 = scmp.eq.s32.totalorder %s27, 0
    %p111 = por %p109, %p110
    %p112 = scmp.ne.s32.totalorder %s101, %s104
    %p113 = scmp.eq.s32.totalorder %s32, 3
    %p114 = por %p112, %p113
    %p115 = scmp.ne.s32.totalorder %s104, %s105
    %p116 = scmp.eq.s32.totalorder %s32, 0
    %p117 = por %p115, %p116
    %p118 = scmp.ne.s32.totalorder %s104, %s105
    %p119 = scmp.eq.s32.totalorder %s33, 3
    %p120 = por %p118, %p119
    %p122 = scmp.ne.s32.totalorder %s105, %s121
    %p123 = scmp.eq.s32.totalorder %s33, 0
    %p124 = por %p122, %p123
    %s125 = ssub.s32 %s35, %s42
    %p126 = scmp.eq.s32.totalorder %s125, 0
    %s128 = sadd.s32 %s127, 1
    %s129 = scalar_select %p126, %s127, %s128
    %p132 = pneg %p126
    %p133 = scmp.eq.s32.totalorder %s27, 3
    %p134 = por %p132, %p133
    %p135 = scmp.ne.s32.totalorder %s127, %s130
    %p136 = scmp.eq.s32.totalorder %s27, 0
    %p137 = por %p135, %p136
    %p138 = scmp.ne.s32.totalorder %s127, %s130
    %p139 = scmp.eq.s32.totalorder %s32, 3
    %p140 = por %p138, %p139
    %p141 = scmp.ne.s32.totalorder %s130, %s131
    %p142 = scmp.eq.s32.totalorder %s32, 0
    %p143 = por %p141, %p142
    %p144 = scmp.ne.s32.totalorder %s130, %s131
    %p145 = scmp.eq.s32.totalorder %s33, 3
    %p146 = por %p144, %p145
    %p148 = scmp.ne.s32.totalorder %s131, %s147
    %p149 = scmp.eq.s32.totalorder %s33, 0
    %p150 = por %p148, %p149
    %s151 = ssub.s32 %s35, %s42
    %p152 = scmp.eq.s32.totalorder %s151, 0
    %s154 = sadd.s32 %s153, 1
    %s155 = scalar_select %p152, %s153, %s154
    %p158 = pneg %p152
    %p159 = scmp.eq.s32.totalorder %s27, 3
    %p160 = por %p158, %p159
    %p161 = scmp.ne.s32.totalorder %s153, %s156
    %p162 = scmp.eq.s32.totalorder %s27, 0
    %p163 = por %p161, %p162
    %p164 = scmp.ne.s32.totalorder %s153, %s156
    %p165 = scmp.eq.s32.totalorder %s32, 3
    %p166 = por %p164, %p165
    %p167 = scmp.ne.s32.totalorder %s156, %s157
    %p168 = scmp.eq.s32.totalorder %s32, 0
    %p169 = por %p167, %p168
    %p170 = scmp.ne.s32.totalorder %s156, %s157
    %p171 = scmp.eq.s32.totalorder %s33, 3
    %p172 = por %p170, %p171
    %p174 = scmp.ne.s32.totalorder %s157, %s173
    %p175 = scmp.eq.s32.totalorder %s33, 0
    %p176 = por %p174, %p175
    %s177 = ssub.s32 %s35, %s42
    %p178 = scmp.eq.s32.totalorder %s177, 0
    %s180 = sadd.s32 %s179, 1
    %s181 = scalar_select %p178, %s179, %s180
    %p184 = pneg %p178
    %p185 = scmp.eq.s32.totalorder %s27, 3
    %p186 = por %p184, %p185
    %p187 = scmp.ne.s32.totalorder %s179, %s182
    %p188 = scmp.eq.s32.totalorder %s27, 0
    %p189 = por %p187, %p188
    %p190 = scmp.ne.s32.totalorder %s179, %s182
    %p191 = scmp.eq.s32.totalorder %s32, 3
    %p192 = por %p190, %p191
    %p193 = scmp.ne.s32.totalorder %s182, %s183
    %p194 = scmp.eq.s32.totalorder %s32, 0
    %p195 = por %p193, %p194
    %p196 = scmp.ne.s32.totalorder %s182, %s183
    %p197 = scmp.eq.s32.totalorder %s33, 3
    %p198 = por %p196, %p197
    %p200 = scmp.ne.s32.totalorder %s183, %s199
    %p201 = scmp.eq.s32.totalorder %s33, 0
    %p202 = por %p200, %p201
    %s203 = ssub.s32 %s35, %s42
    %p204 = scmp.eq.s32.totalorder %s203, 0
    %s206 = sadd.s32 %s205, 1
    %s207 = scalar_select %p204, %s205, %s206
    %p210 = pneg %p204
    %p211 = scmp.eq.s32.totalorder %s27, 3
    %p212 = por %p210, %p211
    %p213 = scmp.ne.s32.totalorder %s205, %s208
    %p214 = scmp.eq.s32.totalorder %s27, 0
    %p215 = por %p213, %p214
    %p216 = scmp.ne.s32.totalorder %s205, %s208
    %p217 = scmp.eq.s32.totalorder %s32, 3
    %p218 = por %p216, %p217
    %p219 = scmp.ne.s32.totalorder %s208, %s209
    %p220 = scmp.eq.s32.totalorder %s32, 0
    %p221 = por %p219, %p220
    %p222 = scmp.ne.s32.totalorder %s208, %s209
    %p223 = scmp.eq.s32.totalorder %s33, 3
    %p224 = por %p222, %p223
    %p226 = scmp.ne.s32.totalorder %s209, %s225
    %p227 = scmp.eq.s32.totalorder %s33, 0
    %p228 = por %p226, %p227
    %s229 = ssub.s32 %s35, %s42
    %p230 = scmp.eq.s32.totalorder %s229, 0
    %s232 = sadd.s32 %s231, 1
    %s233 = scalar_select %p230, %s231, %s232
    %p236 = pneg %p230
    %p237 = scmp.eq.s32.totalorder %s27, 3
    %p238 = por %p236, %p237
    %p239 = scmp.ne.s32.totalorder %s231, %s234
    %p240 = scmp.eq.s32.totalorder %s27, 0
    %p241 = por %p239, %p240
    %p242 = scmp.ne.s32.totalorder %s231, %s234
    %p243 = scmp.eq.s32.totalorder %s32, 3
    %p244 = por %p242, %p243
    %p245 = scmp.ne.s32.totalorder %s234, %s235
    %p246 = scmp.eq.s32.totalorder %s32, 0
    %p247 = por %p245, %p246
    %p248 = scmp.ne.s32.totalorder %s234, %s235
    %p249 = scmp.eq.s32.totalorder %s33, 3
    %p250 = por %p248, %p249
    %p252 = scmp.ne.s32.totalorder %s235, %s251
    %p253 = scmp.eq.s32.totalorder %s33, 0
    %p254 = por %p252, %p253
    %s255 = ssub.s32 %s35, %s42
    %p256 = scmp.eq.s32.totalorder %s255, 0
    %s258 = sadd.s32 %s257, 1
    %s259 = scalar_select %p256, %s257, %s258
    %p262 = pneg %p256
    %p263 = scmp.eq.s32.totalorder %s27, 3
    %p264 = por %p262, %p263
    %p265 = scmp.ne.s32.totalorder %s257, %s260
    %p266 = scmp.eq.s32.totalorder %s27, 0
    %p267 = por %p265, %p266
    %p268 = scmp.ne.s32.totalorder %s257, %s260
    %p269 = scmp.eq.s32.totalorder %s32, 3
    %p270 = por %p268, %p269
    %p271 = scmp.ne.s32.totalorder %s260, %s261
    %p272 = scmp.eq.s32.totalorder %s32, 0
    %p273 = por %p271, %p272
    %p274 = scmp.ne.s32.totalorder %s260, %s261
    %p275 = scmp.eq.s32.totalorder %s33, 3
    %p276 = por %p274, %p275
    %p278 = scmp.ne.s32.totalorder %s261, %s277
    %p279 = scmp.eq.s32.totalorder %s33, 0
    %p280 = por %p278, %p279
    %s281 = ssub.s32 %s35, %s42
    %p282 = scmp.eq.s32.totalorder %s281, 0
    %s284 = sadd.s32 %s283, 1
    %s285 = scalar_select %p282, %s283, %s284
    %p288 = pneg %p282
    %p289 = scmp.eq.s32.totalorder %s27, 3
    %p290 = por %p288, %p289
    %p291 = scmp.ne.s32.totalorder %s283, %s286
    %p292 = scmp.eq.s32.totalorder %s27, 0
    %p293 = por %p291, %p292
    %p294 = scmp.ne.s32.totalorder %s283, %s286
    %p295 = scmp.eq.s32.totalorder %s32, 3
    %p296 = por %p294, %p295
    %p297 = scmp.ne.s32.totalorder %s286, %s287
    %p298 = scmp.eq.s32.totalorder %s32, 0
    %p299 = por %p297, %p298
    %p300 = scmp.ne.s32.totalorder %s286, %s287
    %p301 = scmp.eq.s32.totalorder %s33, 3
    %p302 = por %p300, %p301
    %p304 = scmp.ne.s32.totalorder %s287, %s303
    %p305 = scmp.eq.s32.totalorder %s33, 0
    %p306 = por %p304, %p305
    %s307 = ssub.s32 %s35, %s42
    %p308 = scmp.eq.s32.totalorder %s307, 0
    %s310 = sadd.s32 %s309, 1
    %s311 = scalar_select %p308, %s309, %s310
    %p314 = pneg %p308
    %p315 = scmp.eq.s32.totalorder %s27, 3
    %p316 = por %p314, %p315
    %p317 = scmp.ne.s32.totalorder %s309, %s312
    %p318 = scmp.eq.s32.totalorder %s27, 0
    %p319 = por %p317, %p318
    %p320 = scmp.ne.s32.totalorder %s309, %s312
    %p321 = scmp.eq.s32.totalorder %s32, 3
    %p322 = por %p320, %p321
    %p323 = scmp.ne.s32.totalorder %s312, %s313
    %p324 = scmp.eq.s32.totalorder %s32, 0
    %p325 = por %p323, %p324
    %p326 = scmp.ne.s32.totalorder %s312, %s313
    %p327 = scmp.eq.s32.totalorder %s33, 3
    %p328 = por %p326, %p327
    %p330 = scmp.ne.s32.totalorder %s313, %s329
    %p331 = scmp.eq.s32.totalorder %s33, 0
    %p332 = por %p330, %p331
    %s333 = ssub.s32 %s35, %s42
    %p334 = scmp.eq.s32.totalorder %s333, 0
    %s336 = sadd.s32 %s335, 1
    %s337 = scalar_select %p334, %s335, %s336
    %p340 = pneg %p334
    %p341 = scmp.eq.s32.totalorder %s27, 3
    %p342 = por %p340, %p341
    %p343 = scmp.ne.s32.totalorder %s335, %s338
    %p344 = scmp.eq.s32.totalorder %s27, 0
    %p345 = por %p343, %p344
    %p346 = scmp.ne.s32.totalorder %s335, %s338
    %p347 = scmp.eq.s32.totalorder %s32, 3
    %p348 = por %p346, %p347
    %p349 = scmp.ne.s32.totalorder %s338, %s339
    %p350 = scmp.eq.s32.totalorder %s32, 0
    %p351 = por %p349, %p350
    %p352 = scmp.ne.s32.totalorder %s338, %s339
    %p353 = scmp.eq.s32.totalorder %s33, 3
    %p354 = por %p352, %p353
    %p356 = scmp.ne.s32.totalorder %s339, %s355
    %p357 = scmp.eq.s32.totalorder %s33, 0
    %p358 = por %p356, %p357
    %s359 = ssub.s32 %s35, %s42
    %p360 = scmp.eq.s32.totalorder %s359, 0
    %s362 = sadd.s32 %s361, 1
    %s363 = scalar_select %p360, %s361, %s362
    %p366 = pneg %p360
    %p367 = scmp.eq.s32.totalorder %s27, 3
    %p368 = por %p366, %p367
    %p369 = scmp.ne.s32.totalorder %s361, %s364
    %p370 = scmp.eq.s32.totalorder %s27, 0
    %p371 = por %p369, %p370
    %p372 = scmp.ne.s32.totalorder %s361, %s364
    %p373 = scmp.eq.s32.totalorder %s32, 3
    %p374 = por %p372, %p373
    %p375 = scmp.ne.s32.totalorder %s364, %s365
    %p376 = scmp.eq.s32.totalorder %s32, 0
    %p377 = por %p375, %p376
    %p378 = scmp.ne.s32.totalorder %s364, %s365
    %p379 = scmp.eq.s32.totalorder %s33, 3
    %p380 = por %p378, %p379
    %p382 = scmp.ne.s32.totalorder %s365, %s381
    %p383 = scmp.eq.s32.totalorder %s33, 0
    %p384 = por %p382, %p383
    %s385 = ssub.s32 %s35, %s42
    %p386 = scmp.eq.s32.totalorder %s385, 0
    %s388 = sadd.s32 %s387, 1
    %s389 = scalar_select %p386, %s387, %s388
    %p392 = pneg %p386
    %p393 = scmp.eq.s32.totalorder %s27, 3
    %p394 = por %p392, %p393
    %p395 = scmp.ne.s32.totalorder %s387, %s390
    %p396 = scmp.eq.s32.totalorder %s27, 0
    %p397 = por %p395, %p396
    %p398 = scmp.ne.s32.totalorder %s387, %s390
    %p399 = scmp.eq.s32.totalorder %s32, 3
    %p400 = por %p398, %p399
    %p401 = scmp.ne.s32.totalorder %s390, %s391
    %p402 = scmp.eq.s32.totalorder %s32, 0
    %p403 = por %p401, %p402
    %p404 = scmp.ne.s32.totalorder %s390, %s391
    %p405 = scmp.eq.s32.totalorder %s33, 3
    %p406 = por %p404, %p405
    %p408 = scmp.ne.s32.totalorder %s391, %s407
    %p409 = scmp.eq.s32.totalorder %s33, 0
    %p410 = por %p408, %p409
    %s411 = ssub.s32 %s35, %s42
    %p412 = scmp.eq.s32.totalorder %s411, 0
    %s414 = sadd.s32 %s413, 1
    %s415 = scalar_select %p412, %s413, %s414
    %p418 = pneg %p412
    %p419 = scmp.eq.s32.totalorder %s27, 3
    %p420 = por %p418, %p419
    %p421 = scmp.ne.s32.totalorder %s413, %s416
    %p422 = scmp.eq.s32.totalorder %s27, 0
    %p423 = por %p421, %p422
    %p424 = scmp.ne.s32.totalorder %s413, %s416
    %p425 = scmp.eq.s32.totalorder %s32, 3
    %p426 = por %p424, %p425
    %p427 = scmp.ne.s32.totalorder %s416, %s417
    %p428 = scmp.eq.s32.totalorder %s32, 0
    %p429 = por %p427, %p428
    %p430 = scmp.ne.s32.totalorder %s416, %s417
    %p431 = scmp.eq.s32.totalorder %s33, 3
    %p432 = por %p430, %p431
    %p434 = scmp.ne.s32.totalorder %s417, %s433
    %p435 = scmp.eq.s32.totalorder %s33, 0
    %p436 = por %p434, %p435
    %s437 = ssub.s32 %s35, %s42
    %p438 = scmp.eq.s32.totalorder %s437, 0
    %s440 = sadd.s32 %s439, 1
    %s441 = scalar_select %p438, %s439, %s440
    %p444 = pneg %p438
    %p445 = scmp.eq.s32.totalorder %s27, 3
    %p446 = por %p444, %p445
    %p447 = scmp.ne.s32.totalorder %s439, %s442
    %p448 = scmp.eq.s32.totalorder %s27, 0
    %p449 = por %p447, %p448
    %p450 = scmp.ne.s32.totalorder %s439, %s442
    %p451 = scmp.eq.s32.totalorder %s32, 3
    %p452 = por %p450, %p451
    %p453 = scmp.ne.s32.totalorder %s442, %s443
    %p454 = scmp.eq.s32.totalorder %s32, 0
    %p455 = por %p453, %p454
    %p456 = scmp.ne.s32.totalorder %s442, %s443
    %p457 = scmp.eq.s32.totalorder %s33, 3
    %p458 = por %p456, %p457
    %p460 = scmp.ne.s32.totalorder %s443, %s459
    %p461 = scmp.eq.s32.totalorder %s33, 0
    %p462 = por %p460, %p461
    %s463 = ssub.s32 %s35, %s42
    %p464 = scmp.eq.s32.totalorder %s463, 0
    %s466 = sadd.s32 %s465, 1
    %s467 = scalar_select %p464, %s465, %s466
    %p470 = pneg %p464
    %p471 = scmp.eq.s32.totalorder %s27, 3
    %p472 = por %p470, %p471
    %p473 = scmp.ne.s32.totalorder %s465, %s468
    %p474 = scmp.eq.s32.totalorder %s27, 0
    %p475 = por %p473, %p474
    %p476 = scmp.ne.s32.totalorder %s465, %s468
    %p477 = scmp.eq.s32.totalorder %s32, 3
    %p478 = por %p476, %p477
    %p479 = scmp.ne.s32.totalorder %s468, %s469
    %p480 = scmp.eq.s32.totalorder %s32, 0
    %p481 = por %p479, %p480
    %p482 = scmp.ne.s32.totalorder %s468, %s469
    %p483 = scmp.eq.s32.totalorder %s33, 3
    %p484 = por %p482, %p483
    %p486 = scmp.ne.s32.totalorder %s469, %s485
    %p487 = scmp.eq.s32.totalorder %s33, 0
    %p488 = por %p486, %p487
    %s489 = ssub.s32 %s35, %s42
    %p490 = scmp.eq.s32.totalorder %s489, 0
    %s492 = sadd.s32 %s491, 1
    %s493 = scalar_select %p490, %s491, %s492
    %p496 = pneg %p490
    %p497 = scmp.eq.s32.totalorder %s27, 3
    %p498 = por %p496, %p497
    %p499 = scmp.ne.s32.totalorder %s491, %s494
    %p500 = scmp.eq.s32.totalorder %s27, 0
    %p501 = por %p499, %p500
    %p502 = scmp.ne.s32.totalorder %s491, %s494
    %p503 = scmp.eq.s32.totalorder %s32, 3
    %p504 = por %p502, %p503
    %p505 = scmp.ne.s32.totalorder %s494, %s495
    %p506 = scmp.eq.s32.totalorder %s32, 0
    %p507 = por %p505, %p506
    %p508 = scmp.ne.s32.totalorder %s494, %s495
    %p509 = scmp.eq.s32.totalorder %s33, 3
    %p510 = por %p508, %p509
    %p512 = scmp.ne.s32.totalorder %s495, %s511
    %p513 = scmp.eq.s32.totalorder %s33, 0
    %p514 = por %p512, %p513
    %s515 = ssub.s32 %s35, %s42
    %p516 = scmp.eq.s32.totalorder %s515, 0
    %s518 = sadd.s32 %s517, 1
    %s519 = scalar_select %p516, %s517, %s518
    %p522 = pneg %p516
    %p523 = scmp.eq.s32.totalorder %s27, 3
    %p524 = por %p522, %p523
    %p525 = scmp.ne.s32.totalorder %s517, %s520
    %p526 = scmp.eq.s32.totalorder %s27, 0
    %p527 = por %p525, %p526
    %p528 = scmp.ne.s32.totalorder %s517, %s520
    %p529 = scmp.eq.s32.totalorder %s32, 3
    %p530 = por %p528, %p529
    %p531 = scmp.ne.s32.totalorder %s520, %s521
    %p532 = scmp.eq.s32.totalorder %s32, 0
    %p533 = por %p531, %p532
    %p534 = scmp.ne.s32.totalorder %s520, %s521
    %p535 = scmp.eq.s32.totalorder %s33, 3
    %p536 = por %p534, %p535
    %p538 = scmp.ne.s32.totalorder %s521, %s537
    %p539 = scmp.eq.s32.totalorder %s33, 0
    %p540 = por %p538, %p539
    %s542 = sadd.s32 %s541, 1
    %p545 = scmp.eq.s32.totalorder %s27, 3
    %p546 = scmp.ne.s32.totalorder %s541, %s543
    %p547 = scmp.eq.s32.totalorder %s27, 0
    %p548 = por %p546, %p547
    %p549 = scmp.ne.s32.totalorder %s541, %s543
    %p550 = scmp.eq.s32.totalorder %s32, 3
    %p551 = por %p549, %p550
    %p552 = scmp.ne.s32.totalorder %s543, %s544
    %p553 = scmp.eq.s32.totalorder %s32, 0
    %p554 = por %p552, %p553
    %p555 = scmp.ne.s32.totalorder %s543, %s544
    %p556 = scmp.eq.s32.totalorder %s33, 3
    %p557 = por %p555, %p556
    %p559 = scmp.ne.s32.totalorder %s544, %s558
    %p560 = scmp.eq.s32.totalorder %s33, 0
    %p561 = por %p559, %p560
    %s563 = sadd.s32 %s562, 1
    %p566 = scmp.eq.s32.totalorder %s27, 3
    %p567 = scmp.ne.s32.totalorder %s562, %s564
    %p568 = scmp.eq.s32.totalorder %s27, 0
    %p569 = por %p567, %p568
    %p570 = scmp.ne.s32.totalorder %s562, %s564
    %p571 = scmp.eq.s32.totalorder %s32, 3
    %p572 = por %p570, %p571
    %p573 = scmp.ne.s32.totalorder %s564, %s565
    %p574 = scmp.eq.s32.totalorder %s32, 0
    %p575 = por %p573, %p574
    %p576 = scmp.ne.s32.totalorder %s564, %s565
    %p577 = scmp.eq.s32.totalorder %s33, 3
    %p578 = por %p576, %p577
    %p580 = scmp.ne.s32.totalorder %s565, %s579
    %p581 = scmp.eq.s32.totalorder %s33, 0
    %p582 = por %p580, %p581
    %s583 = ssub.s32 %s34, %s46
    %p584 = scmp.eq.s32.totalorder %s583, 0
    %s586 = sadd.s32 %s585, 1
    %s587 = scalar_select %p584, %s585, %s586
    %p590 = pneg %p584
    %p591 = scmp.eq.s32.totalorder %s27, 3
    %p592 = por %p590, %p591
    %p593 = scmp.ne.s32.totalorder %s585, %s588
    %p594 = scmp.eq.s32.totalorder %s27, 0
    %p595 = por %p593, %p594
    %p596 = scmp.ne.s32.totalorder %s585, %s588
    %p597 = scmp.eq.s32.totalorder %s32, 3
    %p598 = por %p596, %p597
    %p599 = scmp.ne.s32.totalorder %s588, %s589
    %p600 = scmp.eq.s32.totalorder %s32, 0
    %p601 = por %p599, %p600
    %p602 = scmp.ne.s32.totalorder %s588, %s589
    %p603 = scmp.eq.s32.totalorder %s33, 3
    %p604 = por %p602, %p603
    %p606 = scmp.ne.s32.totalorder %s589, %s605
    %p607 = scmp.eq.s32.totalorder %s33, 0
    %p608 = por %p606, %p607
    %p609 = scmp.le.s32.totalorder 1, %s27
    %p610 = scmp.lt.s32.totalorder %s27, 5
    %p611 = pnand %p609, %p610
    %p612 = pneg %p611
    // Predicated region
    $region9: #{sas_forward.1} parent=5 // pred_check
      _
    $region10: #{sas_forward.1} parent=5 // pred_check_branch
      %614 = sbr.rel (%p611) target = $region12
    $region11: #{sas_forward.1} parent=5 // pred_region
      %s615 = ssub.s32 %s27, 1
      // Predicated region
      $region13: #{sas_forward.1} parent=11 // pred_check
        %p616 = pneg %p554
      $region14: #{sas_forward.1} parent=11 // pred_check_branch
        %618 = sbr.rel (%p616) target = $region16
      $region15: #{sas_forward.1} parent=11 // pred_region
        _
      $region16: #{sas_forward.1} parent=11 // pred_fallthru
        _
      // Predicated region
      $region17: #{sas_forward.1} parent=11 // pred_check
        %p619 = pneg %p575
      $region18: #{sas_forward.1} parent=11 // pred_check_branch
        %621 = sbr.rel (%p619) target = $region20
      $region19: #{sas_forward.1} parent=11 // pred_region
        _
      $region20: #{sas_forward.1} parent=11 // pred_fallthru
        _
    $region12: #{sas_forward.1} parent=5 // pred_fallthru
      _
    %p622 = scmp.lt.s32.totalorder %s27, 4
    // Predicated region
    $region21: #{sas_forward.1} parent=5 // pred_check
      %p623 = pneg %p622
    $region22: #{sas_forward.1} parent=5 // pred_check_branch
      %625 = sbr.rel (%p623) target = $region24
    $region23: #{sas_forward.1} parent=5 // pred_region
      // Predicated region
      $region25: #{sas_forward.1} parent=23 // pred_check
        %p626 = pneg %p59
      $region26: #{sas_forward.1} parent=23 // pred_check_branch
        %628 = sbr.rel (%p626) target = $region28
      $region27: #{sas_forward.1} parent=23 // pred_region
        %s629 = smul.u32 2, %s34
        %p630 = scmp.lt.s32.totalorder %s629, 3
        %s631 = scalar_select %p630, %s629, 3
        %s632 = scalar_lea.vmem %s0, %s631
        %s633 = smul.u32 2, %s34
      $region28: #{sas_forward.1} parent=23 // pred_fallthru
        _
      // Predicated region
      $region29: #{sas_forward.1} parent=23 // pred_check
        %p634 = pneg %p85
      $region30: #{sas_forward.1} parent=23 // pred_check_branch
        %636 = sbr.rel (%p634) target = $region32
      $region31: #{sas_forward.1} parent=23 // pred_region
        %s637 = smul.u32 2, %s34
        %p638 = scmp.lt.s32.totalorder %s637, 3
        %s639 = scalar_select %p638, %s637, 3
        %s640 = smul.addr %s639, 8
        %s641 = scalar_lea.vmem %s1, %s640
        %s642 = smul.u32 2, %s34
      $region32: #{sas_forward.1} parent=23 // pred_fallthru
        _
      // Predicated region
      $region33: #{sas_forward.1} parent=23 // pred_check
        %p643 = pneg %p111
      $region34: #{sas_forward.1} parent=23 // pred_check_branch
        %645 = sbr.rel (%p643) target = $region36
      $region35: #{sas_forward.1} parent=23 // pred_region
        %s646 = smul.u32 2, %s34
        %p647 = scmp.lt.s32.totalorder %s646, 3
        %s648 = scalar_select %p647, %s646, 3
        %s649 = smul.addr %s648, 8
        %s650 = scalar_lea.vmem %s2, %s649
        %s651 = smul.u32 2, %s34
      $region36: #{sas_forward.1} parent=23 // pred_fallthru
        _
      // Predicated region
      $region37: #{sas_forward.1} parent=23 // pred_check
        %p652 = pneg %p137
      $region38: #{sas_forward.1} parent=23 // pred_check_branch
        %654 = sbr.rel (%p652) target = $region40
      $region39: #{sas_forward.1} parent=23 // pred_region
        %p655 = scmp.lt.s32.totalorder %s35, 1
        %s656 = scalar_select %p655, %s35, 1
        %s657 = smul.addr %s656, 4
        %s658 = smul.addr %s657, 4
        %s659 = scalar_lea.vmem %s3, %s658
      $region40: #{sas_forward.1} parent=23 // pred_fallthru
        _
      // Predicated region
      $region41: #{sas_forward.1} parent=23 // pred_check
        %p660 = pneg %p163
      $region42: #{sas_forward.1} parent=23 // pred_check_branch
        %662 = sbr.rel (%p660) target = $region44
      $region43: #{sas_forward.1} parent=23 // pred_region
        %p663 = scmp.lt.s32.totalorder %s35, 1
        %s664 = scalar_select %p663, %s35, 1
        %s665 = smul.addr %s664, 4
        %s666 = smul.addr %s665, 4
        %s667 = scalar_lea.vmem %s4, %s666
      $region44: #{sas_forward.1} parent=23 // pred_fallthru
        _
      // Predicated region
      $region45: #{sas_forward.1} parent=23 // pred_check
        %p668 = pneg %p189
      $region46: #{sas_forward.1} parent=23 // pred_check_branch
        %670 = sbr.rel (%p668) target = $region48
      $region47: #{sas_forward.1} parent=23 // pred_region
        %p671 = scmp.lt.s32.totalorder %s35, 1
        %s672 = scalar_select %p671, %s35, 1
        %s673 = smul.addr %s672, 4
        %s674 = smul.addr %s673, 4
        %s675 = scalar_lea.vmem %s5, %s674
      $region48: #{sas_forward.1} parent=23 // pred_fallthru
        _
      // Predicated region
      $region49: #{sas_forward.1} parent=23 // pred_check
        %p676 = pneg %p215
      $region50: #{sas_forward.1} parent=23 // pred_check_branch
        %678 = sbr.rel (%p676) target = $region52
      $region51: #{sas_forward.1} parent=23 // pred_region
        %p679 = scmp.lt.s32.totalorder %s35, 1
        %s680 = scalar_select %p679, %s35, 1
        %s681 = smul.addr %s680, 4
        %s682 = smul.addr %s681, 4
        %s683 = scalar_lea.vmem %s6, %s682
      $region52: #{sas_forward.1} parent=23 // pred_fallthru
        _
      // Predicated region
      $region53: #{sas_forward.1} parent=23 // pred_check
        %p684 = pneg %p241
      $region54: #{sas_forward.1} parent=23 // pred_check_branch
        %686 = sbr.rel (%p684) target = $region56
      $region55: #{sas_forward.1} parent=23 // pred_region
        %p687 = scmp.lt.s32.totalorder %s35, 1
        %s688 = scalar_select %p687, %s35, 1
        %s689 = scalar_lea.vmem %s7, %s688
      $region56: #{sas_forward.1} parent=23 // pred_fallthru
        _
      // Predicated region
      $region57: #{sas_forward.1} parent=23 // pred_check
        %p690 = pneg %p267
      $region58: #{sas_forward.1} parent=23 // pred_check_branch
        %692 = sbr.rel (%p690) target = $region60
      $region59: #{sas_forward.1} parent=23 // pred_region
        %p693 = scmp.lt.s32.totalorder %s35, 1
        %s694 = scalar_select %p693, %s35, 1
        %s695 = scalar_lea.vmem %s8, %s694
      $region60: #{sas_forward.1} parent=23 // pred_fallthru
        _
      // Predicated region
      $region61: #{sas_forward.1} parent=23 // pred_check
        %p696 = pneg %p293
      $region62: #{sas_forward.1} parent=23 // pred_check_branch
        %698 = sbr.rel (%p696) target = $region64
      $region63: #{sas_forward.1} parent=23 // pred_region
        %p699 = scmp.lt.s32.totalorder %s35, 1
        %s700 = scalar_select %p699, %s35, 1
        %s701 = scalar_lea.vmem %s9, %s700
      $region64: #{sas_forward.1} parent=23 // pred_fallthru
        _
      // Predicated region
      $region65: #{sas_forward.1} parent=23 // pred_check
        %p702 = pneg %p319
      $region66: #{sas_forward.1} parent=23 // pred_check_branch
        %704 = sbr.rel (%p702) target = $region68
      $region67: #{sas_forward.1} parent=23 // pred_region
        %p705 = scmp.lt.s32.totalorder %s35, 1
        %s706 = scalar_select %p705, %s35, 1
        %s707 = scalar_lea.vmem %s10, %s706
      $region68: #{sas_forward.1} parent=23 // pred_fallthru
        _
      // Predicated region
      $region69: #{sas_forward.1} parent=23 // pred_check
        %p708 = pneg %p345
      $region70: #{sas_forward.1} parent=23 // pred_check_branch
        %710 = sbr.rel (%p708) target = $region72
      $region71: #{sas_forward.1} parent=23 // pred_region
        %p711 = scmp.lt.s32.totalorder %s35, 1
        %s712 = scalar_select %p711, %s35, 1
        %s713 = scalar_lea.vmem %s11, %s712
      $region72: #{sas_forward.1} parent=23 // pred_fallthru
        _
      // Predicated region
      $region73: #{sas_forward.1} parent=23 // pred_check
        %p714 = pneg %p371
      $region74: #{sas_forward.1} parent=23 // pred_check_branch
        %716 = sbr.rel (%p714) target = $region76
      $region75: #{sas_forward.1} parent=23 // pred_region
        %p717 = scmp.lt.s32.totalorder %s35, 1
        %s718 = scalar_select %p717, %s35, 1
        %s719 = scalar_lea.vmem %s12, %s718
      $region76: #{sas_forward.1} parent=23 // pred_fallthru
        _
      // Predicated region
      $region77: #{sas_forward.1} parent=23 // pred_check
        %p720 = pneg %p397
      $region78: #{sas_forward.1} parent=23 // pred_check_branch
        %722 = sbr.rel (%p720) target = $region80
      $region79: #{sas_forward.1} parent=23 // pred_region
        %p723 = scmp.lt.s32.totalorder %s35, 1
        %s724 = scalar_select %p723, %s35, 1
        %s725 = scalar_lea.vmem %s13, %s724
      $region80: #{sas_forward.1} parent=23 // pred_fallthru
        _
      // Predicated region
      $region81: #{sas_forward.1} parent=23 // pred_check
        %p726 = pneg %p423
      $region82: #{sas_forward.1} parent=23 // pred_check_branch
        %728 = sbr.rel (%p726) target = $region84
      $region83: #{sas_forward.1} parent=23 // pred_region
        %p729 = scmp.lt.s32.totalorder %s35, 1
        %s730 = scalar_select %p729, %s35, 1
        %s731 = scalar_lea.vmem %s14, %s730
      $region84: #{sas_forward.1} parent=23 // pred_fallthru
        _
      // Predicated region
      $region85: #{sas_forward.1} parent=23 // pred_check
        %p732 = pneg %p449
      $region86: #{sas_forward.1} parent=23 // pred_check_branch
        %734 = sbr.rel (%p732) target = $region88
      $region87: #{sas_forward.1} parent=23 // pred_region
        %p735 = scmp.lt.s32.totalorder %s35, 1
        %s736 = scalar_select %p735, %s35, 1
        %s737 = smul.addr %s736, 4
        %s738 = smul.addr %s737, 4
        %s739 = scalar_lea.vmem %s15, %s738
      $region88: #{sas_forward.1} parent=23 // pred_fallthru
        _
      // Predicated region
      $region89: #{sas_forward.1} parent=23 // pred_check
        %p740 = pneg %p475
      $region90: #{sas_forward.1} parent=23 // pred_check_branch
        %742 = sbr.rel (%p740) target = $region92
      $region91: #{sas_forward.1} parent=23 // pred_region
        %p743 = scmp.lt.s32.totalorder %s35, 1
        %s744 = scalar_select %p743, %s35, 1
        %s745 = scalar_lea.vmem %s16, %s744
      $region92: #{sas_forward.1} parent=23 // pred_fallthru
        _
      // Predicated region
      $region93: #{sas_forward.1} parent=23 // pred_check
        %p746 = pneg %p501
      $region94: #{sas_forward.1} parent=23 // pred_check_branch
        %748 = sbr.rel (%p746) target = $region96
      $region95: #{sas_forward.1} parent=23 // pred_region
        %p749 = scmp.lt.s32.totalorder %s35, 1
        %s750 = scalar_select %p749, %s35, 1
        %s751 = smul.addr %s750, 4
        %s752 = smul.addr %s751, 4
        %s753 = scalar_lea.vmem %s17, %s752
      $region96: #{sas_forward.1} parent=23 // pred_fallthru
        _
      // Predicated region
      $region97: #{sas_forward.1} parent=23 // pred_check
        %p754 = pneg %p527
      $region98: #{sas_forward.1} parent=23 // pred_check_branch
        %756 = sbr.rel (%p754) target = $region100
      $region99: #{sas_forward.1} parent=23 // pred_region
        %p757 = scmp.lt.s32.totalorder %s35, 1
        %s758 = scalar_select %p757, %s35, 1
        %s759 = scalar_lea.vmem %s18, %s758
      $region100: #{sas_forward.1} parent=23 // pred_fallthru
        _
    $region24: #{sas_forward.1} parent=5 // pred_fallthru
      _
    %p760 = scmp.le.s32.totalorder 1, %s27
    %p761 = scmp.lt.s32.totalorder %s27, 5
    %p762 = pnand %p760, %p761
    %p763 = pneg %p762
    // Predicated region
    $region101: #{sas_forward.1} parent=5 // pred_check
      _
    $region102: #{sas_forward.1} parent=5 // pred_check_branch
      %765 = sbr.rel (%p762) target = $region104
    $region103: #{sas_forward.1} parent=5 // pred_region
      %s766 = ssub.s32 %s27, 1
      %s767 = smul.u32 2, %s36
      %p768 = scmp.lt.s32.totalorder %s767, 3
      %s769 = scalar_select %p768, %s767, 3
      %s770 = scalar_lea.vmem %s0, %s769
      %p771 = pneg %p65
      %p772 = pneg %p62
      %s773 = smul.u32 2, %s36
      %p774 = scmp.lt.s32.totalorder %s773, 3
      %s775 = scalar_select %p774, %s773, 3
      %s776 = smul.addr %s775, 8
      %s777 = scalar_lea.vmem %s1, %s776
      %p778 = pneg %p91
      %p779 = pneg %p88
      %s780 = smul.u32 2, %s36
      %p781 = scmp.lt.s32.totalorder %s780, 3
      %s782 = scalar_select %p781, %s780, 3
      %s783 = smul.addr %s782, 8
      %s784 = scalar_lea.vmem %s2, %s783
      %p785 = pneg %p117
      %p786 = pneg %p114
      %p787 = scmp.lt.s32.totalorder %s37, 1
      %s788 = scalar_select %p787, %s37, 1
      %s789 = smul.addr %s788, 4
      %s790 = smul.addr %s789, 4
      %s791 = scalar_lea.vmem %s3, %s790
      %p792 = pneg %p143
      %p793 = pneg %p140
      %p794 = scmp.lt.s32.totalorder %s37, 1
      %s795 = scalar_select %p794, %s37, 1
      %s796 = smul.addr %s795, 4
      %s797 = smul.addr %s796, 4
      %s798 = scalar_lea.vmem %s4, %s797
      %p799 = pneg %p169
      %p800 = pneg %p166
      %p801 = scmp.lt.s32.totalorder %s37, 1
      %s802 = scalar_select %p801, %s37, 1
      %s803 = smul.addr %s802, 4
      %s804 = smul.addr %s803, 4
      %s805 = scalar_lea.vmem %s5, %s804
      %p806 = pneg %p195
      %p807 = pneg %p192
      %p808 = scmp.lt.s32.totalorder %s37, 1
      %s809 = scalar_select %p808, %s37, 1
      %s810 = smul.addr %s809, 4
      %s811 = smul.addr %s810, 4
      %s812 = scalar_lea.vmem %s6, %s811
      %p813 = pneg %p221
      %p814 = pneg %p218
      %p815 = scmp.lt.s32.totalorder %s37, 1
      %s816 = scalar_select %p815, %s37, 1
      %s817 = scalar_lea.vmem %s7, %s816
      %p818 = pneg %p247
      %p819 = pneg %p244
      %p820 = scmp.lt.s32.totalorder %s37, 1
      %s821 = scalar_select %p820, %s37, 1
      %s822 = scalar_lea.vmem %s8, %s821
      %p823 = pneg %p273
      %p824 = pneg %p270
      %p825 = scmp.lt.s32.totalorder %s37, 1
      %s826 = scalar_select %p825, %s37, 1
      %s827 = scalar_lea.vmem %s9, %s826
      %p828 = pneg %p299
      %p829 = pneg %p296
      %p830 = scmp.lt.s32.totalorder %s37, 1
      %s831 = scalar_select %p830, %s37, 1
      %s832 = scalar_lea.vmem %s10, %s831
      %p833 = pneg %p325
      %p834 = pneg %p322
      %p835 = scmp.lt.s32.totalorder %s37, 1
      %s836 = scalar_select %p835, %s37, 1
      %s837 = scalar_lea.vmem %s11, %s836
      %p838 = pneg %p351
      %p839 = pneg %p348
      %p840 = scmp.lt.s32.totalorder %s37, 1
      %s841 = scalar_select %p840, %s37, 1
      %s842 = scalar_lea.vmem %s12, %s841
      %p843 = pneg %p377
      %p844 = pneg %p374
      %p845 = scmp.lt.s32.totalorder %s37, 1
      %s846 = scalar_select %p845, %s37, 1
      %s847 = scalar_lea.vmem %s13, %s846
      %p848 = pneg %p403
      %p849 = pneg %p400
      %p850 = scmp.lt.s32.totalorder %s37, 1
      %s851 = scalar_select %p850, %s37, 1
      %s852 = scalar_lea.vmem %s14, %s851
      %p853 = pneg %p429
      %p854 = pneg %p426
      %p855 = scmp.lt.s32.totalorder %s37, 1
      %s856 = scalar_select %p855, %s37, 1
      %s857 = smul.addr %s856, 4
      %s858 = smul.addr %s857, 4
      %s859 = scalar_lea.vmem %s15, %s858
      %p860 = pneg %p455
      %p861 = pneg %p452
      %p862 = scmp.lt.s32.totalorder %s37, 1
      %s863 = scalar_select %p862, %s37, 1
      %s864 = scalar_lea.vmem %s16, %s863
      %p865 = pneg %p481
      %p866 = pneg %p478
      %p867 = scmp.lt.s32.totalorder %s37, 1
      %s868 = scalar_select %p867, %s37, 1
      %s869 = smul.addr %s868, 4
      %s870 = smul.addr %s869, 4
      %s871 = scalar_lea.vmem %s17, %s870
      %p872 = pneg %p507
      %p873 = pneg %p504
      %p874 = scmp.lt.s32.totalorder %s37, 1
      %s875 = scalar_select %p874, %s37, 1
      %s876 = scalar_lea.vmem %s18, %s875
      %p877 = pneg %p533
      %p878 = pneg %p530
      %p879 = pneg %p554
      %p880 = pneg %p551
      %p881 = pneg %p575
      %p882 = pneg %p572
      %p883 = pneg %p601
      %p884 = pneg %p598
      %s885 = smul.u32 2, %s36
      %p886 = scmp.lt.s32.totalorder %s885, 3
      %s887 = scalar_select %p886, %s885, 3
      %s888 = smul.addr %s887, 8
      %s889 = scalar_lea.vmem %s21, %s888
      %s890 = smul.u32 2, %s36
      %p891 = scmp.lt.s32.totalorder %s890, 3
      %s892 = scalar_select %p891, %s890, 3
      %s893 = scalar_lea.vmem %s0, %s892
      %s894 = smul.u32 2, %s36
      %s895 = smul.u32 2, %s36
      %p896 = scmp.lt.s32.totalorder %s895, 3
      %s897 = scalar_select %p896, %s895, 3
      %s898 = smul.addr %s897, 8
      %s899 = scalar_lea.vmem %s1, %s898
      %s900 = smul.u32 2, %s36
      %s901 = smul.u32 2, %s36
      %p902 = scmp.lt.s32.totalorder %s901, 3
      %s903 = scalar_select %p902, %s901, 3
      %s904 = smul.addr %s903, 8
      %s905 = scalar_lea.vmem %s2, %s904
      %s906 = smul.u32 2, %s36
      %p907 = scmp.lt.s32.totalorder %s37, 1
      %s908 = scalar_select %p907, %s37, 1
      %s909 = smul.addr %s908, 4
      %s910 = smul.addr %s909, 4
      %s911 = scalar_lea.vmem %s3, %s910
      %p912 = scmp.lt.s32.totalorder %s37, 1
      %s913 = scalar_select %p912, %s37, 1
      %s914 = smul.addr %s913, 4
      %s915 = smul.addr %s914, 4
      %s916 = scalar_lea.vmem %s4, %s915
      %p917 = scmp.lt.s32.totalorder %s37, 1
      %s918 = scalar_select %p917, %s37, 1
      %s919 = smul.addr %s918, 4
      %s920 = smul.addr %s919, 4
      %s921 = scalar_lea.vmem %s5, %s920
      %p922 = scmp.lt.s32.totalorder %s37, 1
      %s923 = scalar_select %p922, %s37, 1
      %s924 = smul.addr %s923, 4
      %s925 = smul.addr %s924, 4
      %s926 = scalar_lea.vmem %s6, %s925
      %p927 = scmp.lt.s32.totalorder %s37, 1
      %s928 = scalar_select %p927, %s37, 1
      %s929 = scalar_lea.vmem %s7, %s928
      %p930 = scmp.lt.s32.totalorder %s37, 1
      %s931 = scalar_select %p930, %s37, 1
      %s932 = scalar_lea.vmem %s8, %s931
      %p933 = scmp.lt.s32.totalorder %s37, 1
      %s934 = scalar_select %p933, %s37, 1
      %s935 = scalar_lea.vmem %s9, %s934
      %p936 = scmp.lt.s32.totalorder %s37, 1
      %s937 = scalar_select %p936, %s37, 1
      %s938 = scalar_lea.vmem %s10, %s937
      %p939 = scmp.lt.s32.totalorder %s37, 1
      %s940 = scalar_select %p939, %s37, 1
      %s941 = scalar_lea.vmem %s11, %s940
      %p942 = scmp.lt.s32.totalorder %s37, 1
      %s943 = scalar_select %p942, %s37, 1
      %s944 = scalar_lea.vmem %s12, %s943
      %p945 = scmp.lt.s32.totalorder %s37, 1
      %s946 = scalar_select %p945, %s37, 1
      %s947 = scalar_lea.vmem %s13, %s946
      %p948 = scmp.lt.s32.totalorder %s37, 1
      %s949 = scalar_select %p948, %s37, 1
      %s950 = scalar_lea.vmem %s14, %s949
      %p951 = scmp.lt.s32.totalorder %s37, 1
      %s952 = scalar_select %p951, %s37, 1
      %s953 = smul.addr %s952, 4
      %s954 = smul.addr %s953, 4
      %s955 = scalar_lea.vmem %s15, %s954
      %p956 = scmp.lt.s32.totalorder %s37, 1
      %s957 = scalar_select %p956, %s37, 1
      %s958 = scalar_lea.vmem %s16, %s957
      %p959 = scmp.lt.s32.totalorder %s37, 1
      %s960 = scalar_select %p959, %s37, 1
      %s961 = smul.addr %s960, 4
      %s962 = smul.addr %s961, 4
      %s963 = scalar_lea.vmem %s17, %s962
      %p964 = scmp.lt.s32.totalorder %s37, 1
      %s965 = scalar_select %p964, %s37, 1
      %s966 = scalar_lea.vmem %s18, %s965
      %s967 = smul.u32 2, %s36
      %p968 = scmp.lt.s32.totalorder %s967, 3
      %s969 = scalar_select %p968, %s967, 3
      %s970 = smul.addr %s969, 8
      %s971 = scalar_lea.vmem %s21, %s970
      %s972 = smul.u32 2, %s36
      %p974 = scmp.eq.s32.totalorder %s37, 0
      // Predicated region
      $region105: #{sas_forward.1} parent=103 // pred_check
        %p975 = pneg %p974
      $region106: #{sas_forward.1} parent=103 // pred_check_branch
        %977 = sbr.rel (%p975) target = $region108
      $region107: #{sas_forward.1} parent=103 // pred_region
        %v978 = vld [vmem:[%s905] sm:$0xff]
        %v979 = vld [vmem:[%s905 + $0x8] sm:$0xff]
        %vm980 = vcmask 261120
        %981 = vst.msk [vmem:[#allocation2] sm:$0xff] %vm980, %v978
        %982 = vst.msk [vmem:[#allocation2 + $0x8] sm:$0xff] %vm980, %v979
        %v983 = vlaneseq
        %v984 = vshrl.u32 %v983, 7
        %v985 = vlaneseq
        %v986 = vand.u32 %v985, 127
        %vm987 = vcmp.le.s32.totalorder %v986, %v984
        %v988 = vld [vmem:[%s893] sm:$0x1]
        %v989 = vld [vmem:[%s893 + $0x1] sm:$0x1]
        %vm990 = vcmp.gt.f32.partialorder %v988, 0.5
        %vm991 = vcmp.gt.f32.partialorder %v989, 0.5
        %v992 = vsel %vm990, 1, 0
        %v993 = vsel %vm991, 1, 0
        %v994 = vlaneseq
        %v995 = vshrl.u32 %v994, 7
        %v996 = vsub.s32 0, %v995
        %v997 = vrot.slane %v992, %v996
        %v998 = vlaneseq
        %v999 = vshrl.u32 %v998, 7
        %v1000 = vsub.s32 0, %v999
        %v1001 = vrot.slane %v993, %v1000
        %vm1002 = vcmp.eq.s32.totalorder %v997, 1
        %vm1003 = vcmp.eq.s32.totalorder %v1001, 1
        %vm1004 = vmand %vm987, %vm1002
        %vm1005 = vmand %vm987, %vm1003
        %v1006 = vsel %vm1004, 0.0, -1e+30
        %v1007 = vsel %vm1005, 0.0, -1e+30
        %vm1008 = vcmask 64512
        %1009 = vst.msk [vmem:[#allocation3] sm:$0xff] %vm1008, %v1006
        %1010 = vst.msk [vmem:[#allocation3 + $0x8] sm:$0xff] %vm1008, %v1007
      $region108: #{sas_forward.1} parent=103 // pred_fallthru
        _
      %v1011 = vld [vmem:[#allocation2] sm:$0xff]
      %v1012 = vld [vmem:[#allocation2 + $0x8] sm:$0xff]
      %v1013 = vld [vmem:[%s899] sm:$0xff]
      %v1014 = vld [vmem:[%s899 + $0x8] sm:$0xff]
      %v1015 = vld [vmem:[%s941] sm:$0x1]
      %v1016 = vld [vmem:[%s944] sm:$0x1]
      %vm1017 = vcmask 261120
      %v1018 = vsel %vm1017, %v1011, 0.0
      %1019 = vadd.xlane.f32.xlu0 %v1018
      %v1020 = vpop.xlane.xlu0 %1019
      %v1021 = vsel %vm1017, %v1012, 0.0
      %1022 = vadd.xlane.f32.xlu0 %v1021
      %v1023 = vpop.xlane.xlu0 %1022
      %v1024 = vrcp.pop 32.0
      %v1025 = vmul.f32 %v1020, %v1024
      %v1026 = vmul.f32 %v1023, %v1024
      %v1027 = vsub.f32 %v1011, %v1025
      %v1028 = vsub.f32 %v1012, %v1026
      %v1029 = vmul.f32 %v1027, %v1027
      %v1030 = vmul.f32 %v1028, %v1028
      %v1031 = vsel %vm1017, %v1029, 0.0
      %1032 = vadd.xlane.f32.xlu0 %v1031
      %v1033 = vpop.xlane.xlu0 %1032
      %v1034 = vsel %vm1017, %v1030, 0.0
      %1035 = vadd.xlane.f32.xlu0 %v1034
      %v1036 = vpop.xlane.xlu0 %1035
      %v1037 = vmul.f32 %v1033, %v1024
      %v1038 = vmul.f32 %v1036, %v1024
      %v1039 = vadd.f32 %v1037, 1e-05
      %v1040 = vadd.f32 %v1038, 1e-05
      %v1041 = vrsqrt.pop %v1039
      %v1042 = vrsqrt.pop %v1040
      %v1043 = vmul.f32 %v1027, %v1041
      %v1044 = vmul.f32 %v1028, %v1042
      %v1046 = vlaneseq
      %v1047 = vshrl.u32 %v1046, 7
      %v1048 = vsub.s32 0, %v1047
      %v1049 = vrot.slane %v1015, %v1048
      %v1051 = vmul.f32 %v1043, %v1049
      %v1052 = vmul.f32 %v1044, %v1049
      %v1054 = vlaneseq
      %v1055 = vshrl.u32 %v1054, 7
      %v1056 = vsub.s32 0, %v1055
      %v1057 = vrot.slane %v1016, %v1056
      %v1059 = vadd.f32 %v1051, %v1057
      %v1060 = vadd.f32 %v1052, %v1057
      %v1061 = vpack.c.bf16 %v1060, %v1059
      %v1062 = vld [vmem:[%s911] sm:$0xf]
      %v1063 = vld [vmem:[%s911 + $0x4] sm:$0xf]
      %v1064 = vld [vmem:[%s911 + $0x8] sm:$0xf]
      %v1065 = vld [vmem:[%s911 + $0xc] sm:$0xf]
      %v1066 = vld [vmem:[%s929] sm:$0x1]
      %v1068 = vlaneseq
      %v1069 = vshrl.u32 %v1068, 7
      %v1070 = vsub.s32 0, %v1069
      %v1071 = vrot.slane %v1066, %v1070
      %v1077 = vunpack.c.l.b16 %v1062
      %v1078 = vunpack.c.l.b16 %v1063
      %v1079 = vunpack.c.l.b16 %v1064
      %v1080 = vunpack.c.l.b16 %v1065
      %v1081 = vpack.c.b16 %v1078, %v1077
      %v1082 = vpack.c.b16 %v1080, %v1079
      %v1086 = vsel %vm1017, %v1061, 0
      %1088 = vmatprep.subr.bf16.mxu0 0
      %1089 = vmatpush1.bf16.msra.mxu0 %v1081
      %1090 = vmatprep.subr.bf16.mxu0 0
      %1091 = vmatpush1.bf16.msra.mxu0 %v1082
      %1092 = vmatprep.subr.bf16.mxu0 0
      %1093 = vmatpush1.bf16.msra.mxu0 0
      %1094 = vmatprep.subr.bf16.mxu0 0
      %1095 = vmatpush1.bf16.msra.mxu0 0
      %1096 = vmatprep.subr.bf16.mxu0 0
      %1097 = vmatpush1.bf16.msra.mxu0 0
      %1098 = vmatprep.subr.bf16.mxu0 0
      %1099 = vmatpush1.bf16.msra.mxu0 0
      %1100 = vmatprep.subr.bf16.mxu0 0
      %1101 = vmatpush1.bf16.msra.mxu0 0
      %1102 = vmatprep.subr.bf16.mxu0 0
      %1103 = vmatpush1.bf16.msra.mxu0 0
      %1104 = vmatprep.subr.bf16.mxu0 0
      %1105 = vmatpush1.bf16.msra.mxu0 0
      %1106 = vmatprep.subr.bf16.mxu0 0
      %1107 = vmatpush1.bf16.msra.mxu0 0
      %1108 = vmatprep.subr.bf16.mxu0 0
      %1109 = vmatpush1.bf16.msra.mxu0 0
      %1110 = vmatprep.subr.bf16.mxu0 0
      %1111 = vmatpush1.bf16.msra.mxu0 0
      %1112 = vmatprep.subr.bf16.mxu0 0
      %1113 = vmatpush1.bf16.msra.mxu0 0
      %1114 = vmatprep.subr.bf16.mxu0 0
      %1115 = vmatpush1.bf16.msra.mxu0 0
      %1116 = vmatprep.subr.bf16.mxu0 0
      %1117 = vmatpush1.bf16.msra.mxu0 0
      %1118 = vmatprep.subr.bf16.mxu0 0
      %1119 = vmatpush1.bf16.msra.mxu0 0
      %1120 = vmatprep.mubr.bf16.mxu0 0
      %1121 = vmatmul.mubr.bf16.gmra.mrb[0].mxu0 %v1086
      %v1122 = vpop.f32.mrb[0].mxu0
      %v1123 = vadd.f32 %v1071, %v1122
      %v1124 = vpop.f32.mrb[0].mxu0
      %v1125 = vpop.f32.mrb[0].mxu0
      %v1126 = vadd.f32 %v1071, %v1125
      %v1127 = vpop.f32.mrb[0].mxu0
      %1128 = vdwg.mxu0
      %v1129 = vpack.c.bf16 %v1012, %v1011
      %v1130 = vld [vmem:[%s916] sm:$0xf]
      %v1131 = vld [vmem:[%s916 + $0x4] sm:$0xf]
      %v1132 = vld [vmem:[%s916 + $0x8] sm:$0xf]
      %v1133 = vld [vmem:[%s916 + $0xc] sm:$0xf]
      %v1134 = vld [vmem:[%s932] sm:$0x1]
      %v1136 = vlaneseq
      %v1137 = vshrl.u32 %v1136, 7
      %v1138 = vsub.s32 0, %v1137
      %v1139 = vrot.slane %v1134, %v1138
      %v1145 = vunpack.c.l.b16 %v1130
      %v1146 = vunpack.c.l.b16 %v1131
      %v1147 = vunpack.c.l.b16 %v1132
      %v1148 = vunpack.c.l.b16 %v1133
      %v1149 = vpack.c.b16 %v1146, %v1145
      %v1150 = vpack.c.b16 %v1148, %v1147
      %v1154 = vsel %vm1017, %v1129, 0
      %1156 = vmatprep.subr.bf16.mxu0 0
      %1157 = vmatpush1.bf16.msra.mxu0 %v1149
      %1158 = vmatprep.subr.bf16.mxu0 0
      %1159 = vmatpush1.bf16.msra.mxu0 %v1150
      %1160 = vmatprep.subr.bf16.mxu0 0
      %1161 = vmatpush1.bf16.msra.mxu0 0
      %1162 = vmatprep.subr.bf16.mxu0 0
      %1163 = vmatpush1.bf16.msra.mxu0 0
      %1164 = vmatprep.subr.bf16.mxu0 0
      %1165 = vmatpush1.bf16.msra.mxu0 0
      %1166 = vmatprep.subr.bf16.mxu0 0
      %1167 = vmatpush1.bf16.msra.mxu0 0
      %1168 = vmatprep.subr.bf16.mxu0 0
      %1169 = vmatpush1.bf16.msra.mxu0 0
      %1170 = vmatprep.subr.bf16.mxu0 0
      %1171 = vmatpush1.bf16.msra.mxu0 0
      %1172 = vmatprep.subr.bf16.mxu0 0
      %1173 = vmatpush1.bf16.msra.mxu0 0
      %1174 = vmatprep.subr.bf16.mxu0 0
      %1175 = vmatpush1.bf16.msra.mxu0 0
      %1176 = vmatprep.subr.bf16.mxu0 0
      %1177 = vmatpush1.bf16.msra.mxu0 0
      %1178 = vmatprep.subr.bf16.mxu0 0
      %1179 = vmatpush1.bf16.msra.mxu0 0
      %1180 = vmatprep.subr.bf16.mxu0 0
      %1181 = vmatpush1.bf16.msra.mxu0 0
      %1182 = vmatprep.subr.bf16.mxu0 0
      %1183 = vmatpush1.bf16.msra.mxu0 0
      %1184 = vmatprep.subr.bf16.mxu0 0
      %1185 = vmatpush1.bf16.msra.mxu0 0
      %1186 = vmatprep.subr.bf16.mxu0 0
      %1187 = vmatpush1.bf16.msra.mxu0 0
      %1188 = vmatprep.mubr.bf16.mxu0 0
      %1189 = vmatmul.mubr.bf16.gmra.mrb[0].mxu0 %v1154
      %v1190 = vpop.f32.mrb[0].mxu0
      %v1191 = vadd.f32 %v1139, %v1190
      %v1192 = vpop.f32.mrb[0].mxu0
      %v1193 = vpop.f32.mrb[0].mxu0
      %v1194 = vadd.f32 %v1139, %v1193
      %v1195 = vpop.f32.mrb[0].mxu0
      %1196 = vdwg.mxu0
      %v1197 = vld [vmem:[%s921] sm:$0xf]
      %v1198 = vld [vmem:[%s921 + $0x4] sm:$0xf]
      %v1199 = vld [vmem:[%s921 + $0x8] sm:$0xf]
      %v1200 = vld [vmem:[%s921 + $0xc] sm:$0xf]
      %v1201 = vld [vmem:[%s935] sm:$0x1]
      %v1203 = vlaneseq
      %v1204 = vshrl.u32 %v1203, 7
      %v1205 = vsub.s32 0, %v1204
      %v1206 = vrot.slane %v1201, %v1205
      %v1212 = vunpack.c.l.b16 %v1197
      %v1213 = vunpack.c.l.b16 %v1198
      %v1214 = vunpack.c.l.b16 %v1199
      %v1215 = vunpack.c.l.b16 %v1200
      %v1216 = vpack.c.b16 %v1213, %v1212
      %v1217 = vpack.c.b16 %v1215, %v1214
      %1220 = vmatprep.subr.bf16.mxu0 0
      %1221 = vmatpush1.bf16.msra.mxu0 %v1216
      %1222 = vmatprep.subr.bf16.mxu0 0
      %1223 = vmatpush1.bf16.msra.mxu0 %v1217
      %1224 = vmatprep.subr.bf16.mxu0 0
      %1225 = vmatpush1.bf16.msra.mxu0 0
      %1226 = vmatprep.subr.bf16.mxu0 0
      %1227 = vmatpush1.bf16.msra.mxu0 0
      %1228 = vmatprep.subr.bf16.mxu0 0
      %1229 = vmatpush1.bf16.msra.mxu0 0
      %1230 = vmatprep.subr.bf16.mxu0 0
      %1231 = vmatpush1.bf16.msra.mxu0 0
      %1232 = vmatprep.subr.bf16.mxu0 0
      %1233 = vmatpush1.bf16.msra.mxu0 0
      %1234 = vmatprep.subr.bf16.mxu0 0
      %1235 = vmatpush1.bf16.msra.mxu0 0
      %1236 = vmatprep.subr.bf16.mxu0 0
      %1237 = vmatpush1.bf16.msra.mxu0 0
      %1238 = vmatprep.subr.bf16.mxu0 0
      %1239 = vmatpush1.bf16.msra.mxu0 0
      %1240 = vmatprep.subr.bf16.mxu0 0
      %1241 = vmatpush1.bf16.msra.mxu0 0
      %1242 = vmatprep.subr.bf16.mxu0 0
      %1243 = vmatpush1.bf16.msra.mxu0 0
      %1244 = vmatprep.subr.bf16.mxu0 0
      %1245 = vmatpush1.bf16.msra.mxu0 0
      %1246 = vmatprep.subr.bf16.mxu0 0
      %1247 = vmatpush1.bf16.msra.mxu0 0
      %1248 = vmatprep.subr.bf16.mxu0 0
      %1249 = vmatpush1.bf16.msra.mxu0 0
      %1250 = vmatprep.subr.bf16.mxu0 0
      %1251 = vmatpush1.bf16.msra.mxu0 0
      %1252 = vmatprep.mubr.bf16.mxu0 0
      %1253 = vmatmul.mubr.bf16.gmra.mrb[0].mxu0 %v1154
      %v1254 = vpop.f32.mrb[0].mxu0
      %v1255 = vadd.f32 %v1206, %v1254
      %v1256 = vpop.f32.mrb[0].mxu0
      %v1257 = vpop.f32.mrb[0].mxu0
      %v1258 = vadd.f32 %v1206, %v1257
      %v1259 = vpop.f32.mrb[0].mxu0
      %1260 = vdwg.mxu0
      %v1261 = vld [vmem:[#allocation3] sm:$0xff]
      %vm1262 = vcmask 130048
      %v1264 = vsel %vm1262, %v1123, 0
      %v1267 = vsel %vm1262, %v1191, 0
      %1269 = vmatprep.subr.mxu0 0.0
      %1270 = vmatpush1.xpose.msra.mxu0 %v1267
      %1271 = vmatprep.subr.mxu0 0.0
      %1272 = vmatpush1.xpose.msra.mxu0 0.0
      %1273 = vmatprep.subr.mxu0 0.0
      %1274 = vmatpush1.xpose.msra.mxu0 0.0
      %1275 = vmatprep.subr.mxu0 0.0
      %1276 = vmatpush1.xpose.msra.mxu0 0.0
      %1277 = vmatprep.subr.mxu0 0.0
      %1278 = vmatpush1.xpose.msra.mxu0 0.0
      %1279 = vmatprep.subr.mxu0 0.0
      %1280 = vmatpush1.xpose.msra.mxu0 0.0
      %1281 = vmatprep.subr.mxu0 0.0
      %1282 = vmatpush1.xpose.msra.mxu0 0.0
      %1283 = vmatprep.subr.mxu0 0.0
      %1284 = vmatpush1.xpose.msra.mxu0 0.0
      %1285 = vmatprep.subr.mxu0 0.0
      %1286 = vmatpush1.xpose.msra.mxu0 0.0
      %1287 = vmatprep.subr.mxu0 0.0
      %1288 = vmatpush1.xpose.msra.mxu0 0.0
      %1289 = vmatprep.subr.mxu0 0.0
      %1290 = vmatpush1.xpose.msra.mxu0 0.0
      %1291 = vmatprep.subr.mxu0 0.0
      %1292 = vmatpush1.xpose.msra.mxu0 0.0
      %1293 = vmatprep.subr.mxu0 0.0
      %1294 = vmatpush1.xpose.msra.mxu0 0.0
      %1295 = vmatprep.subr.mxu0 0.0
      %1296 = vmatpush1.xpose.msra.mxu0 0.0
      %1297 = vmatprep.subr.mxu0 0.0
      %1298 = vmatpush1.xpose.msra.mxu0 0.0
      %1299 = vmatprep.subr.mxu0 0.0
      %1300 = vmatpush1.xpose.msra.mxu0 0.0
      %1301 = vmatprep.subr.mxu0 0.0
      %1302 = vmatpush1.xpose.msra.mxu0 0.0
      %1303 = vmatprep.subr.mxu0 0.0
      %1304 = vmatpush1.xpose.msra.mxu0 0.0
      %1305 = vmatprep.subr.mxu0 0.0
      %1306 = vmatpush1.xpose.msra.mxu0 0.0
      %1307 = vmatprep.subr.mxu0 0.0
      %1308 = vmatpush1.xpose.msra.mxu0 0.0
      %1309 = vmatprep.subr.mxu0 0.0
      %1310 = vmatpush1.xpose.msra.mxu0 0.0
      %1311 = vmatprep.subr.mxu0 0.0
      %1312 = vmatpush1.xpose.msra.mxu0 0.0
      %1313 = vmatprep.subr.mxu0 0.0
      %1314 = vmatpush1.xpose.msra.mxu0 0.0
      %1315 = vmatprep.subr.mxu0 0.0
      %1316 = vmatpush1.xpose.msra.mxu0 0.0
      %1317 = vmatprep.subr.mxu0 0.0
      %1318 = vmatpush1.xpose.msra.mxu0 0.0
      %1319 = vmatprep.subr.mxu0 0.0
      %1320 = vmatpush1.xpose.msra.mxu0 0.0
      %1321 = vmatprep.subr.mxu0 0.0
      %1322 = vmatpush1.xpose.msra.mxu0 0.0
      %1323 = vmatprep.subr.mxu0 0.0
      %1324 = vmatpush1.xpose.msra.mxu0 0.0
      %1325 = vmatprep.subr.mxu0 0.0
      %1326 = vmatpush1.xpose.msra.mxu0 0.0
      %1327 = vmatprep.subr.mxu0 0.0
      %1328 = vmatpush1.xpose.msra.mxu0 0.0
      %1329 = vmatprep.subr.mxu0 0.0
      %1330 = vmatpush1.xpose.msra.mxu0 0.0
      %1331 = vmatprep.subr.mxu0 0.0
      %1332 = vmatpush1.xpose.msra.mxu0 0.0
      %1333 = vmatprep.mubr.f32.mxu0 0.0
      %1334 = vmatmul.mubr.f32.gmra.mrb[0].mxu0 %v1264
      %v1335 = vpop.f32.mrb[0].mxu0
      %v1336 = vadd.f32 0.0, %v1335
      %v1337 = vpop.f32.mrb[0].mxu0
      %1338 = vdwg.mxu0
      %v1339 = vmul.f32 %v1336, 0.25
      %v1340 = vadd.f32 %v1339, %v1261
      %vm1341 = vcmask 64512
      %v1342 = vsel %vm1341, %v1340, -inf
      %1343 = vmax.xlane.f32.xlu0 %v1342
      %v1344 = vpop.xlane.xlu0 %1343
      %v1345 = vsub.f32 %v1340, %v1344
      %v1346 = vmul.f32 %v1345, 1.442695
      %v1347 = vpow.pop %v1346
      %v1348 = vsel %vm1341, %v1347, 0.0
      %1349 = vadd.xlane.f32.xlu0 %v1348
      %v1350 = vpop.xlane.xlu0 %1349
      %v1351 = vrcp.pop %v1350
      %v1352 = vmul.f32 %v1347, %v1351
      %v1354 = vsel %vm1341, %v1352, 0
      %1356 = vmatprep.subr.mxu0 0.0
      %1357 = vmatpush1.msra.mxu0 %v1255
      %1358 = vmatprep.subr.mxu0 0.0
      %1359 = vmatpush1.msra.mxu0 0.0
      %1360 = vmatprep.subr.mxu0 0.0
      %1361 = vmatpush1.msra.mxu0 0.0
      %1362 = vmatprep.subr.mxu0 0.0
      %1363 = vmatpush1.msra.mxu0 0.0
      %1364 = vmatprep.subr.mxu0 0.0
      %1365 = vmatpush1.msra.mxu0 0.0
      %1366 = vmatprep.subr.mxu0 0.0
      %1367 = vmatpush1.msra.mxu0 0.0
      %1368 = vmatprep.subr.mxu0 0.0
      %1369 = vmatpush1.msra.mxu0 0.0
      %1370 = vmatprep.subr.mxu0 0.0
      %1371 = vmatpush1.msra.mxu0 0.0
      %1372 = vmatprep.subr.mxu0 0.0
      %1373 = vmatpush1.msra.mxu0 0.0
      %1374 = vmatprep.subr.mxu0 0.0
      %1375 = vmatpush1.msra.mxu0 0.0
      %1376 = vmatprep.subr.mxu0 0.0
      %1377 = vmatpush1.msra.mxu0 0.0
      %1378 = vmatprep.subr.mxu0 0.0
      %1379 = vmatpush1.msra.mxu0 0.0
      %1380 = vmatprep.subr.mxu0 0.0
      %1381 = vmatpush1.msra.mxu0 0.0
      %1382 = vmatprep.subr.mxu0 0.0
      %1383 = vmatpush1.msra.mxu0 0.0
      %1384 = vmatprep.subr.mxu0 0.0
      %1385 = vmatpush1.msra.mxu0 0.0
      %1386 = vmatprep.subr.mxu0 0.0
      %1387 = vmatpush1.msra.mxu0 0.0
      %1388 = vmatprep.subr.mxu0 0.0
      %1389 = vmatpush1.msra.mxu0 0.0
      %1390 = vmatprep.subr.mxu0 0.0
      %1391 = vmatpush1.msra.mxu0 0.0
      %1392 = vmatprep.subr.mxu0 0.0
      %1393 = vmatpush1.msra.mxu0 0.0
      %1394 = vmatprep.subr.mxu0 0.0
      %1395 = vmatpush1.msra.mxu0 0.0
      %1396 = vmatprep.subr.mxu0 0.0
      %1397 = vmatpush1.msra.mxu0 0.0
      %1398 = vmatprep.subr.mxu0 0.0
      %1399 = vmatpush1.msra.mxu0 0.0
      %1400 = vmatprep.subr.mxu0 0.0
      %1401 = vmatpush1.msra.mxu0 0.0
      %1402 = vmatprep.subr.mxu0 0.0
      %1403 = vmatpush1.msra.mxu0 0.0
      %1404 = vmatprep.subr.mxu0 0.0
      %1405 = vmatpush1.msra.mxu0 0.0
      %1406 = vmatprep.subr.mxu0 0.0
      %1407 = vmatpush1.msra.mxu0 0.0
      %1408 = vmatprep.subr.mxu0 0.0
      %1409 = vmatpush1.msra.mxu0 0.0
      %1410 = vmatprep.subr.mxu0 0.0
      %1411 = vmatpush1.msra.mxu0 0.0
      %1412 = vmatprep.subr.mxu0 0.0
      %1413 = vmatpush1.msra.mxu0 0.0
      %1414 = vmatprep.subr.mxu0 0.0
      %1415 = vmatpush1.msra.mxu0 0.0
      %1416 = vmatprep.subr.mxu0 0.0
      %1417 = vmatpush1.msra.mxu0 0.0
      %1418 = vmatprep.subr.mxu0 0.0
      %1419 = vmatpush1.msra.mxu0 0.0
      %1420 = vmatprep.mubr.f32.mxu0 0.0
      %1421 = vmatmul.mubr.f32.gmra.mrb[0].mxu0 %v1354
      %v1422 = vpop.f32.mrb[0].mxu0
      %v1423 = vadd.f32 0.0, %v1422
      %v1424 = vpop.f32.mrb[0].mxu0
      %1425 = vdwg.mxu0
      %1426 = vst.msk [vmem:[#allocation4] sm:$0xff] %vm1262, %v1423
      %1427 = vrot.lane.b32.xlu0 %v1123, 112
      %v1428 = vpop.permute.xlu0 %1427
      %1429 = vrot.lane.b32.xlu0 %v1191, 112
      %v1430 = vpop.permute.xlu0 %1429
      %v1431 = vsel %vm1262, %v1428, 0
      %v1433 = vsel %vm1262, %v1430, 0
      %1435 = vmatprep.subr.mxu0 0.0
      %1436 = vmatpush1.xpose.msra.mxu0 %v1433
      %1437 = vmatprep.subr.mxu0 0.0
      %1438 = vmatpush1.xpose.msra.mxu0 0.0
      %1439 = vmatprep.subr.mxu0 0.0
      %1440 = vmatpush1.xpose.msra.mxu0 0.0
      %1441 = vmatprep.subr.mxu0 0.0
      %1442 = vmatpush1.xpose.msra.mxu0 0.0
      %1443 = vmatprep.subr.mxu0 0.0
      %1444 = vmatpush1.xpose.msra.mxu0 0.0
      %1445 = vmatprep.subr.mxu0 0.0
      %1446 = vmatpush1.xpose.msra.mxu0 0.0
      %1447 = vmatprep.subr.mxu0 0.0
      %1448 = vmatpush1.xpose.msra.mxu0 0.0
      %1449 = vmatprep.subr.mxu0 0.0
      %1450 = vmatpush1.xpose.msra.mxu0 0.0
      %1451 = vmatprep.subr.mxu0 0.0
      %1452 = vmatpush1.xpose.msra.mxu0 0.0
      %1453 = vmatprep.subr.mxu0 0.0
      %1454 = vmatpush1.xpose.msra.mxu0 0.0
      %1455 = vmatprep.subr.mxu0 0.0
      %1456 = vmatpush1.xpose.msra.mxu0 0.0
      %1457 = vmatprep.subr.mxu0 0.0
      %1458 = vmatpush1.xpose.msra.mxu0 0.0
      %1459 = vmatprep.subr.mxu0 0.0
      %1460 = vmatpush1.xpose.msra.mxu0 0.0
      %1461 = vmatprep.subr.mxu0 0.0
      %1462 = vmatpush1.xpose.msra.mxu0 0.0
      %1463 = vmatprep.subr.mxu0 0.0
      %1464 = vmatpush1.xpose.msra.mxu0 0.0
      %1465 = vmatprep.subr.mxu0 0.0
      %1466 = vmatpush1.xpose.msra.mxu0 0.0
      %1467 = vmatprep.subr.mxu0 0.0
      %1468 = vmatpush1.xpose.msra.mxu0 0.0
      %1469 = vmatprep.subr.mxu0 0.0
      %1470 = vmatpush1.xpose.msra.mxu0 0.0
      %1471 = vmatprep.subr.mxu0 0.0
      %1472 = vmatpush1.xpose.msra.mxu0 0.0
      %1473 = vmatprep.subr.mxu0 0.0
      %1474 = vmatpush1.xpose.msra.mxu0 0.0
      %1475 = vmatprep.subr.mxu0 0.0
      %1476 = vmatpush1.xpose.msra.mxu0 0.0
      %1477 = vmatprep.subr.mxu0 0.0
      %1478 = vmatpush1.xpose.msra.mxu0 0.0
      %1479 = vmatprep.subr.mxu0 0.0
      %1480 = vmatpush1.xpose.msra.mxu0 0.0
      %1481 = vmatprep.subr.mxu0 0.0
      %1482 = vmatpush1.xpose.msra.mxu0 0.0
      %1483 = vmatprep.subr.mxu0 0.0
      %1484 = vmatpush1.xpose.msra.mxu0 0.0
      %1485 = vmatprep.subr.mxu0 0.0
      %1486 = vmatpush1.xpose.msra.mxu0 0.0
      %1487 = vmatprep.subr.mxu0 0.0
      %1488 = vmatpush1.xpose.msra.mxu0 0.0
      %1489 = vmatprep.subr.mxu0 0.0
      %1490 = vmatpush1.xpose.msra.mxu0 0.0
      %1491 = vmatprep.subr.mxu0 0.0
      %1492 = vmatpush1.xpose.msra.mxu0 0.0
      %1493 = vmatprep.subr.mxu0 0.0
      %1494 = vmatpush1.xpose.msra.mxu0 0.0
      %1495 = vmatprep.subr.mxu0 0.0
      %1496 = vmatpush1.xpose.msra.mxu0 0.0
      %1497 = vmatprep.subr.mxu0 0.0
      %1498 = vmatpush1.xpose.msra.mxu0 0.0
      %1499 = vmatprep.mubr.f32.mxu0 0.0
      %1500 = vmatmul.mubr.f32.gmra.mrb[0].mxu0 %v1431
      %v1501 = vpop.f32.mrb[0].mxu0
      %v1502 = vadd.f32 0.0, %v1501
      %v1503 = vpop.f32.mrb[0].mxu0
      %1504 = vdwg.mxu0
      %v1505 = vmul.f32 %v1502, 0.25
      %v1506 = vadd.f32 %v1505, %v1261
      %v1507 = vsel %vm1341, %v1506, -inf
      %1508 = vmax.xlane.f32.xlu0 %v1507
      %v1509 = vpop.xlane.xlu0 %1508
      %v1510 = vsub.f32 %v1506, %v1509
      %v1511 = vmul.f32 %v1510, 1.442695
      %v1512 = vpow.pop %v1511
      %v1513 = vsel %vm1341, %v1512, 0.0
      %1514 = vadd.xlane.f32.xlu0 %v1513
      %v1515 = vpop.xlane.xlu0 %1514
      %v1516 = vrcp.pop %v1515
      %v1517 = vmul.f32 %v1512, %v1516
      %1519 = vrot.lane.b32.xlu0 %v1255, 112
      %v1520 = vpop.permute.xlu0 %1519
      %v1523 = vsel %vm1341, %v1517, 0
      %1525 = vmatprep.subr.mxu0 0.0
      %1526 = vmatpush1.msra.mxu0 %v1520
      %1527 = vmatprep.subr.mxu0 0.0
      %1528 = vmatpush1.msra.mxu0 0.0
      %1529 = vmatprep.subr.mxu0 0.0
      %1530 = vmatpush1.msra.mxu0 0.0
      %1531 = vmatprep.subr.mxu0 0.0
      %1532 = vmatpush1.msra.mxu0 0.0
      %1533 = vmatprep.subr.mxu0 0.0
      %1534 = vmatpush1.msra.mxu0 0.0
      %1535 = vmatprep.subr.mxu0 0.0
      %1536 = vmatpush1.msra.mxu0 0.0
      %1537 = vmatprep.subr.mxu0 0.0
      %1538 = vmatpush1.msra.mxu0 0.0
      %1539 = vmatprep.subr.mxu0 0.0
      %1540 = vmatpush1.msra.mxu0 0.0
      %1541 = vmatprep.subr.mxu0 0.0
      %1542 = vmatpush1.msra.mxu0 0.0
      %1543 = vmatprep.subr.mxu0 0.0
      %1544 = vmatpush1.msra.mxu0 0.0
      %1545 = vmatprep.subr.mxu0 0.0
      %1546 = vmatpush1.msra.mxu0 0.0
      %1547 = vmatprep.subr.mxu0 0.0
      %1548 = vmatpush1.msra.mxu0 0.0
      %1549 = vmatprep.subr.mxu0 0.0
      %1550 = vmatpush1.msra.mxu0 0.0
      %1551 = vmatprep.subr.mxu0 0.0
      %1552 = vmatpush1.msra.mxu0 0.0
      %1553 = vmatprep.subr.mxu0 0.0
      %1554 = vmatpush1.msra.mxu0 0.0
      %1555 = vmatprep.subr.mxu0 0.0
      %1556 = vmatpush1.msra.mxu0 0.0
      %1557 = vmatprep.subr.mxu0 0.0
      %1558 = vmatpush1.msra.mxu0 0.0
      %1559 = vmatprep.subr.mxu0 0.0
      %1560 = vmatpush1.msra.mxu0 0.0
      %1561 = vmatprep.subr.mxu0 0.0
      %1562 = vmatpush1.msra.mxu0 0.0
      %1563 = vmatprep.subr.mxu0 0.0
      %1564 = vmatpush1.msra.mxu0 0.0
      %1565 = vmatprep.subr.mxu0 0.0
      %1566 = vmatpush1.msra.mxu0 0.0
      %1567 = vmatprep.subr.mxu0 0.0
      %1568 = vmatpush1.msra.mxu0 0.0
      %1569 = vmatprep.subr.mxu0 0.0
      %1570 = vmatpush1.msra.mxu0 0.0
      %1571 = vmatprep.subr.mxu0 0.0
      %1572 = vmatpush1.msra.mxu0 0.0
      %1573 = vmatprep.subr.mxu0 0.0
      %1574 = vmatpush1.msra.mxu0 0.0
      %1575 = vmatprep.subr.mxu0 0.0
      %1576 = vmatpush1.msra.mxu0 0.0
      %1577 = vmatprep.subr.mxu0 0.0
      %1578 = vmatpush1.msra.mxu0 0.0
      %1579 = vmatprep.subr.mxu0 0.0
      %1580 = vmatpush1.msra.mxu0 0.0
      %1581 = vmatprep.subr.mxu0 0.0
      %1582 = vmatpush1.msra.mxu0 0.0
      %1583 = vmatprep.subr.mxu0 0.0
      %1584 = vmatpush1.msra.mxu0 0.0
      %1585 = vmatprep.subr.mxu0 0.0
      %1586 = vmatpush1.msra.mxu0 0.0
      %1587 = vmatprep.subr.mxu0 0.0
      %1588 = vmatpush1.msra.mxu0 0.0
      %1589 = vmatprep.mubr.f32.mxu0 0.0
      %1590 = vmatmul.mubr.f32.gmra.mrb[0].mxu0 %v1523
      %v1591 = vpop.f32.mrb[0].mxu0
      %v1592 = vadd.f32 0.0, %v1591
      %v1593 = vpop.f32.mrb[0].mxu0
      %1594 = vdwg.mxu0
      %1596 = vrot.lane.b32.xlu0 %v1592, 16
      %v1597 = vpop.permute.xlu0 %1596
      %vm1599 = vcmask 261248
      %1600 = vst.msk [vmem:[#allocation4] sm:$0xff] %vm1599, %v1597
      %s1601 = scalar_lea.vmem [#allocation3], 8
      %v1602 = vld [vmem:[%s1601] sm:$0xff]
      %v1604 = vsel %vm1262, %v1126, 0
      %v1607 = vsel %vm1262, %v1194, 0
      %1609 = vmatprep.subr.mxu0 0.0
      %1610 = vmatpush1.xpose.msra.mxu0 %v1607
      %1611 = vmatprep.subr.mxu0 0.0
      %1612 = vmatpush1.xpose.msra.mxu0 0.0
      %1613 = vmatprep.subr.mxu0 0.0
      %1614 = vmatpush1.xpose.msra.mxu0 0.0
      %1615 = vmatprep.subr.mxu0 0.0
      %1616 = vmatpush1.xpose.msra.mxu0 0.0
      %1617 = vmatprep.subr.mxu0 0.0
      %1618 = vmatpush1.xpose.msra.mxu0 0.0
      %1619 = vmatprep.subr.mxu0 0.0
      %1620 = vmatpush1.xpose.msra.mxu0 0.0
      %1621 = vmatprep.subr.mxu0 0.0
      %1622 = vmatpush1.xpose.msra.mxu0 0.0
      %1623 = vmatprep.subr.mxu0 0.0
      %1624 = vmatpush1.xpose.msra.mxu0 0.0
      %1625 = vmatprep.subr.mxu0 0.0
      %1626 = vmatpush1.xpose.msra.mxu0 0.0
      %1627 = vmatprep.subr.mxu0 0.0
      %1628 = vmatpush1.xpose.msra.mxu0 0.0
      %1629 = vmatprep.subr.mxu0 0.0
      %1630 = vmatpush1.xpose.msra.mxu0 0.0
      %1631 = vmatprep.subr.mxu0 0.0
      %1632 = vmatpush1.xpose.msra.mxu0 0.0
      %1633 = vmatprep.subr.mxu0 0.0
      %1634 = vmatpush1.xpose.msra.mxu0 0.0
      %1635 = vmatprep.subr.mxu0 0.0
      %1636 = vmatpush1.xpose.msra.mxu0 0.0
      %1637 = vmatprep.subr.mxu0 0.0
      %1638 = vmatpush1.xpose.msra.mxu0 0.0
      %1639 = vmatprep.subr.mxu0 0.0
      %1640 = vmatpush1.xpose.msra.mxu0 0.0
      %1641 = vmatprep.subr.mxu0 0.0
      %1642 = vmatpush1.xpose.msra.mxu0 0.0
      %1643 = vmatprep.subr.mxu0 0.0
      %1644 = vmatpush1.xpose.msra.mxu0 0.0
      %1645 = vmatprep.subr.mxu0 0.0
      %1646 = vmatpush1.xpose.msra.mxu0 0.0
      %1647 = vmatprep.subr.mxu0 0.0
      %1648 = vmatpush1.xpose.msra.mxu0 0.0
      %1649 = vmatprep.subr.mxu0 0.0
      %1650 = vmatpush1.xpose.msra.mxu0 0.0
      %1651 = vmatprep.subr.mxu0 0.0
      %1652 = vmatpush1.xpose.msra.mxu0 0.0
      %1653 = vmatprep.subr.mxu0 0.0
      %1654 = vmatpush1.xpose.msra.mxu0 0.0
      %1655 = vmatprep.subr.mxu0 0.0
      %1656 = vmatpush1.xpose.msra.mxu0 0.0
      %1657 = vmatprep.subr.mxu0 0.0
      %1658 = vmatpush1.xpose.msra.mxu0 0.0
      %1659 = vmatprep.subr.mxu0 0.0
      %1660 = vmatpush1.xpose.msra.mxu0 0.0
      %1661 = vmatprep.subr.mxu0 0.0
      %1662 = vmatpush1.xpose.msra.mxu0 0.0
      %1663 = vmatprep.subr.mxu0 0.0
      %1664 = vmatpush1.xpose.msra.mxu0 0.0
      %1665 = vmatprep.subr.mxu0 0.0
      %1666 = vmatpush1.xpose.msra.mxu0 0.0
      %1667 = vmatprep.subr.mxu0 0.0
      %1668 = vmatpush1.xpose.msra.mxu0 0.0
      %1669 = vmatprep.subr.mxu0 0.0
      %1670 = vmatpush1.xpose.msra.mxu0 0.0
      %1671 = vmatprep.subr.mxu0 0.0
      %1672 = vmatpush1.xpose.msra.mxu0 0.0
      %1673 = vmatprep.mubr.f32.mxu0 0.0
      %1674 = vmatmul.mubr.f32.gmra.mrb[0].mxu0 %v1604
      %v1675 = vpop.f32.mrb[0].mxu0
      %v1676 = vadd.f32 0.0, %v1675
      %v1677 = vpop.f32.mrb[0].mxu0
      %1678 = vdwg.mxu0
      %v1679 = vmul.f32 %v1676, 0.25
      %v1680 = vadd.f32 %v1679, %v1602
      %v1681 = vsel %vm1341, %v1680, -inf
      %1682 = vmax.xlane.f32.xlu0 %v1681
      %v1683 = vpop.xlane.xlu0 %1682
      %v1684 = vsub.f32 %v1680, %v1683
      %v1685 = vmul.f32 %v1684, 1.442695
      %v1686 = vpow.pop %v1685
      %v1687 = vsel %vm1341, %v1686, 0.0
      %1688 = vadd.xlane.f32.xlu0 %v1687
      %v1689 = vpop.xlane.xlu0 %1688
      %v1690 = vrcp.pop %v1689
      %v1691 = vmul.f32 %v1686, %v1690
      %v1693 = vsel %vm1341, %v1691, 0
      %1695 = vmatprep.subr.mxu0 0.0
      %1696 = vmatpush1.msra.mxu0 %v1258
      %1697 = vmatprep.subr.mxu0 0.0
      %1698 = vmatpush1.msra.mxu0 0.0
      %1699 = vmatprep.subr.mxu0 0.0
      %1700 = vmatpush1.msra.mxu0 0.0
      %1701 = vmatprep.subr.mxu0 0.0
      %1702 = vmatpush1.msra.mxu0 0.0
      %1703 = vmatprep.subr.mxu0 0.0
      %1704 = vmatpush1.msra.mxu0 0.0
      %1705 = vmatprep.subr.mxu0 0.0
      %1706 = vmatpush1.msra.mxu0 0.0
      %1707 = vmatprep.subr.mxu0 0.0
      %1708 = vmatpush1.msra.mxu0 0.0
      %1709 = vmatprep.subr.mxu0 0.0
      %1710 = vmatpush1.msra.mxu0 0.0
      %1711 = vmatprep.subr.mxu0 0.0
      %1712 = vmatpush1.msra.mxu0 0.0
      %1713 = vmatprep.subr.mxu0 0.0
      %1714 = vmatpush1.msra.mxu0 0.0
      %1715 = vmatprep.subr.mxu0 0.0
      %1716 = vmatpush1.msra.mxu0 0.0
      %1717 = vmatprep.subr.mxu0 0.0
      %1718 = vmatpush1.msra.mxu0 0.0
      %1719 = vmatprep.subr.mxu0 0.0
      %1720 = vmatpush1.msra.mxu0 0.0
      %1721 = vmatprep.subr.mxu0 0.0
      %1722 = vmatpush1.msra.mxu0 0.0
      %1723 = vmatprep.subr.mxu0 0.0
      %1724 = vmatpush1.msra.mxu0 0.0
      %1725 = vmatprep.subr.mxu0 0.0
      %1726 = vmatpush1.msra.mxu0 0.0
      %1727 = vmatprep.subr.mxu0 0.0
      %1728 = vmatpush1.msra.mxu0 0.0
      %1729 = vmatprep.subr.mxu0 0.0
      %1730 = vmatpush1.msra.mxu0 0.0
      %1731 = vmatprep.subr.mxu0 0.0
      %1732 = vmatpush1.msra.mxu0 0.0
      %1733 = vmatprep.subr.mxu0 0.0
      %1734 = vmatpush1.msra.mxu0 0.0
      %1735 = vmatprep.subr.mxu0 0.0
      %1736 = vmatpush1.msra.mxu0 0.0
      %1737 = vmatprep.subr.mxu0 0.0
      %1738 = vmatpush1.msra.mxu0 0.0
      %1739 = vmatprep.subr.mxu0 0.0
      %1740 = vmatpush1.msra.mxu0 0.0
      %1741 = vmatprep.subr.mxu0 0.0
      %1742 = vmatpush1.msra.mxu0 0.0
      %1743 = vmatprep.subr.mxu0 0.0
      %1744 = vmatpush1.msra.mxu0 0.0
      %1745 = vmatprep.subr.mxu0 0.0
      %1746 = vmatpush1.msra.mxu0 0.0
      %1747 = vmatprep.subr.mxu0 0.0
      %1748 = vmatpush1.msra.mxu0 0.0
      %1749 = vmatprep.subr.mxu0 0.0
      %1750 = vmatpush1.msra.mxu0 0.0
      %1751 = vmatprep.subr.mxu0 0.0
      %1752 = vmatpush1.msra.mxu0 0.0
      %1753 = vmatprep.subr.mxu0 0.0
      %1754 = vmatpush1.msra.mxu0 0.0
      %1755 = vmatprep.subr.mxu0 0.0
      %1756 = vmatpush1.msra.mxu0 0.0
      %1757 = vmatprep.subr.mxu0 0.0
      %1758 = vmatpush1.msra.mxu0 0.0
      %1759 = vmatprep.mubr.f32.mxu0 0.0
      %1760 = vmatmul.mubr.f32.gmra.mrb[0].mxu0 %v1693
      %v1761 = vpop.f32.mrb[0].mxu0
      %v1762 = vadd.f32 0.0, %v1761
      %v1763 = vpop.f32.mrb[0].mxu0
      %1764 = vdwg.mxu0
      %1765 = vst.msk [vmem:[#allocation4 + $0x8] sm:$0xff] %vm1262, %v1762
      %1766 = vrot.lane.b32.xlu0 %v1126, 112
      %v1767 = vpop.permute.xlu0 %1766
      %1768 = vrot.lane.b32.xlu0 %v1194, 112
      %v1769 = vpop.permute.xlu0 %1768
      %v1770 = vsel %vm1262, %v1767, 0
      %v1772 = vsel %vm1262, %v1769, 0
      %1774 = vmatprep.subr.mxu0 0.0
      %1775 = vmatpush1.xpose.msra.mxu0 %v1772
      %1776 = vmatprep.subr.mxu0 0.0
      %1777 = vmatpush1.xpose.msra.mxu0 0.0
      %1778 = vmatprep.subr.mxu0 0.0
      %1779 = vmatpush1.xpose.msra.mxu0 0.0
      %1780 = vmatprep.subr.mxu0 0.0
      %1781 = vmatpush1.xpose.msra.mxu0 0.0
      %1782 = vmatprep.subr.mxu0 0.0
      %1783 = vmatpush1.xpose.msra.mxu0 0.0
      %1784 = vmatprep.subr.mxu0 0.0
      %1785 = vmatpush1.xpose.msra.mxu0 0.0
      %1786 = vmatprep.subr.mxu0 0.0
      %1787 = vmatpush1.xpose.msra.mxu0 0.0
      %1788 = vmatprep.subr.mxu0 0.0
      %1789 = vmatpush1.xpose.msra.mxu0 0.0
      %1790 = vmatprep.subr.mxu0 0.0
      %1791 = vmatpush1.xpose.msra.mxu0 0.0
      %1792 = vmatprep.subr.mxu0 0.0
      %1793 = vmatpush1.xpose.msra.mxu0 0.0
      %1794 = vmatprep.subr.mxu0 0.0
      %1795 = vmatpush1.xpose.msra.mxu0 0.0
      %1796 = vmatprep.subr.mxu0 0.0
      %1797 = vmatpush1.xpose.msra.mxu0 0.0
      %1798 = vmatprep.subr.mxu0 0.0
      %1799 = vmatpush1.xpose.msra.mxu0 0.0
      %1800 = vmatprep.subr.mxu0 0.0
      %1801 = vmatpush1.xpose.msra.mxu0 0.0
      %1802 = vmatprep.subr.mxu0 0.0
      %1803 = vmatpush1.xpose.msra.mxu0 0.0
      %1804 = vmatprep.subr.mxu0 0.0
      %1805 = vmatpush1.xpose.msra.mxu0 0.0
      %1806 = vmatprep.subr.mxu0 0.0
      %1807 = vmatpush1.xpose.msra.mxu0 0.0
      %1808 = vmatprep.subr.mxu0 0.0
      %1809 = vmatpush1.xpose.msra.mxu0 0.0
      %1810 = vmatprep.subr.mxu0 0.0
      %1811 = vmatpush1.xpose.msra.mxu0 0.0
      %1812 = vmatprep.subr.mxu0 0.0
      %1813 = vmatpush1.xpose.msra.mxu0 0.0
      %1814 = vmatprep.subr.mxu0 0.0
      %1815 = vmatpush1.xpose.msra.mxu0 0.0
      %1816 = vmatprep.subr.mxu0 0.0
      %1817 = vmatpush1.xpose.msra.mxu0 0.0
      %1818 = vmatprep.subr.mxu0 0.0
      %1819 = vmatpush1.xpose.msra.mxu0 0.0
      %1820 = vmatprep.subr.mxu0 0.0
      %1821 = vmatpush1.xpose.msra.mxu0 0.0
      %1822 = vmatprep.subr.mxu0 0.0
      %1823 = vmatpush1.xpose.msra.mxu0 0.0
      %1824 = vmatprep.subr.mxu0 0.0
      %1825 = vmatpush1.xpose.msra.mxu0 0.0
      %1826 = vmatprep.subr.mxu0 0.0
      %1827 = vmatpush1.xpose.msra.mxu0 0.0
      %1828 = vmatprep.subr.mxu0 0.0
      %1829 = vmatpush1.xpose.msra.mxu0 0.0
      %1830 = vmatprep.subr.mxu0 0.0
      %1831 = vmatpush1.xpose.msra.mxu0 0.0
      %1832 = vmatprep.subr.mxu0 0.0
      %1833 = vmatpush1.xpose.msra.mxu0 0.0
      %1834 = vmatprep.subr.mxu0 0.0
      %1835 = vmatpush1.xpose.msra.mxu0 0.0
      %1836 = vmatprep.subr.mxu0 0.0
      %1837 = vmatpush1.xpose.msra.mxu0 0.0
      %1838 = vmatprep.mubr.f32.mxu0 0.0
      %1839 = vmatmul.mubr.f32.gmra.mrb[0].mxu0 %v1770
      %v1840 = vpop.f32.mrb[0].mxu0
      %v1841 = vadd.f32 0.0, %v1840
      %v1842 = vpop.f32.mrb[0].mxu0
      %1843 = vdwg.mxu0
      %v1844 = vmul.f32 %v1841, 0.25
      %v1845 = vadd.f32 %v1844, %v1602
      %v1846 = vsel %vm1341, %v1845, -inf
      %1847 = vmax.xlane.f32.xlu0 %v1846
      %v1848 = vpop.xlane.xlu0 %1847
      %v1849 = vsub.f32 %v1845, %v1848
      %v1850 = vmul.f32 %v1849, 1.442695
      %v1851 = vpow.pop %v1850
      %v1852 = vsel %vm1341, %v1851, 0.0
      %1853 = vadd.xlane.f32.xlu0 %v1852
      %v1854 = vpop.xlane.xlu0 %1853
      %v1855 = vrcp.pop %v1854
      %v1856 = vmul.f32 %v1851, %v1855
      %1858 = vrot.lane.b32.xlu0 %v1258, 112
      %v1859 = vpop.permute.xlu0 %1858
      %v1862 = vsel %vm1341, %v1856, 0
      %1864 = vmatprep.subr.mxu0 0.0
      %1865 = vmatpush1.msra.mxu0 %v1859
      %1866 = vmatprep.subr.mxu0 0.0
      %1867 = vmatpush1.msra.mxu0 0.0
      %1868 = vmatprep.subr.mxu0 0.0
      %1869 = vmatpush1.msra.mxu0 0.0
      %1870 = vmatprep.subr.mxu0 0.0
      %1871 = vmatpush1.msra.mxu0 0.0
      %1872 = vmatprep.subr.mxu0 0.0
      %1873 = vmatpush1.msra.mxu0 0.0
      %1874 = vmatprep.subr.mxu0 0.0
      %1875 = vmatpush1.msra.mxu0 0.0
      %1876 = vmatprep.subr.mxu0 0.0
      %1877 = vmatpush1.msra.mxu0 0.0
      %1878 = vmatprep.subr.mxu0 0.0
      %1879 = vmatpush1.msra.mxu0 0.0
      %1880 = vmatprep.subr.mxu0 0.0
      %1881 = vmatpush1.msra.mxu0 0.0
      %1882 = vmatprep.subr.mxu0 0.0
      %1883 = vmatpush1.msra.mxu0 0.0
      %1884 = vmatprep.subr.mxu0 0.0
      %1885 = vmatpush1.msra.mxu0 0.0
      %1886 = vmatprep.subr.mxu0 0.0
      %1887 = vmatpush1.msra.mxu0 0.0
      %1888 = vmatprep.subr.mxu0 0.0
      %1889 = vmatpush1.msra.mxu0 0.0
      %1890 = vmatprep.subr.mxu0 0.0
      %1891 = vmatpush1.msra.mxu0 0.0
      %1892 = vmatprep.subr.mxu0 0.0
      %1893 = vmatpush1.msra.mxu0 0.0
      %1894 = vmatprep.subr.mxu0 0.0
      %1895 = vmatpush1.msra.mxu0 0.0
      %1896 = vmatprep.subr.mxu0 0.0
      %1897 = vmatpush1.msra.mxu0 0.0
      %1898 = vmatprep.subr.mxu0 0.0
      %1899 = vmatpush1.msra.mxu0 0.0
      %1900 = vmatprep.subr.mxu0 0.0
      %1901 = vmatpush1.msra.mxu0 0.0
      %1902 = vmatprep.subr.mxu0 0.0
      %1903 = vmatpush1.msra.mxu0 0.0
      %1904 = vmatprep.subr.mxu0 0.0
      %1905 = vmatpush1.msra.mxu0 0.0
      %1906 = vmatprep.subr.mxu0 0.0
      %1907 = vmatpush1.msra.mxu0 0.0
      %1908 = vmatprep.subr.mxu0 0.0
      %1909 = vmatpush1.msra.mxu0 0.0
      %1910 = vmatprep.subr.mxu0 0.0
      %1911 = vmatpush1.msra.mxu0 0.0
      %1912 = vmatprep.subr.mxu0 0.0
      %1913 = vmatpush1.msra.mxu0 0.0
      %1914 = vmatprep.subr.mxu0 0.0
      %1915 = vmatpush1.msra.mxu0 0.0
      %1916 = vmatprep.subr.mxu0 0.0
      %1917 = vmatpush1.msra.mxu0 0.0
      %1918 = vmatprep.subr.mxu0 0.0
      %1919 = vmatpush1.msra.mxu0 0.0
      %1920 = vmatprep.subr.mxu0 0.0
      %1921 = vmatpush1.msra.mxu0 0.0
      %1922 = vmatprep.subr.mxu0 0.0
      %1923 = vmatpush1.msra.mxu0 0.0
      %1924 = vmatprep.subr.mxu0 0.0
      %1925 = vmatpush1.msra.mxu0 0.0
      %1926 = vmatprep.subr.mxu0 0.0
      %1927 = vmatpush1.msra.mxu0 0.0
      %1928 = vmatprep.mubr.f32.mxu0 0.0
      %1929 = vmatmul.mubr.f32.gmra.mrb[0].mxu0 %v1862
      %v1930 = vpop.f32.mrb[0].mxu0
      %v1931 = vadd.f32 0.0, %v1930
      %v1932 = vpop.f32.mrb[0].mxu0
      %1933 = vdwg.mxu0
      %1935 = vrot.lane.b32.xlu0 %v1931, 16
      %v1936 = vpop.permute.xlu0 %1935
      %1938 = vst.msk [vmem:[#allocation4 + $0x8] sm:$0xff] %vm1599, %v1936
      %v1939 = vld [vmem:[#allocation4] sm:$0xff]
      %v1940 = vld [vmem:[#allocation4 + $0x8] sm:$0xff]
      %v1941 = vpack.c.bf16 %v1940, %v1939
      %v1942 = vld [vmem:[%s926] sm:$0xf]
      %v1943 = vld [vmem:[%s926 + $0x4] sm:$0xf]
      %v1944 = vld [vmem:[%s926 + $0x8] sm:$0xf]
      %v1945 = vld [vmem:[%s926 + $0xc] sm:$0xf]
      %v1946 = vld [vmem:[%s938] sm:$0x1]
      %v1948 = vlaneseq
      %v1949 = vshrl.u32 %v1948, 7
      %v1950 = vsub.s32 0, %v1949
      %v1951 = vrot.slane %v1946, %v1950
      %v1957 = vunpack.c.l.b16 %v1942
      %v1958 = vunpack.c.l.b16 %v1943
      %v1959 = vunpack.c.l.b16 %v1944
      %v1960 = vunpack.c.l.b16 %v1945
      %v1961 = vpack.c.b16 %v1958, %v1957
      %v1962 = vpack.c.b16 %v1960, %v1959
      %v1966 = vsel %vm1017, %v1941, 0
      %1968 = vmatprep.subr.bf16.mxu0 0
      %1969 = vmatpush1.bf16.msra.mxu0 %v1961
      %1970 = vmatprep.subr.bf16.mxu0 0
      %1971 = vmatpush1.bf16.msra.mxu0 %v1962
      %1972 = vmatprep.subr.bf16.mxu0 0
      %1973 = vmatpush1.bf16.msra.mxu0 0
      %1974 = vmatprep.subr.bf16.mxu0 0
      %1975 = vmatpush1.bf16.msra.mxu0 0
      %1976 = vmatprep.subr.bf16.mxu0 0
      %1977 = vmatpush1.bf16.msra.mxu0 0
      %1978 = vmatprep.subr.bf16.mxu0 0
      %1979 = vmatpush1.bf16.msra.mxu0 0
      %1980 = vmatprep.subr.bf16.mxu0 0
      %1981 = vmatpush1.bf16.msra.mxu0 0
      %1982 = vmatprep.subr.bf16.mxu0 0
      %1983 = vmatpush1.bf16.msra.mxu0 0
      %1984 = vmatprep.subr.bf16.mxu0 0
      %1985 = vmatpush1.bf16.msra.mxu0 0
      %1986 = vmatprep.subr.bf16.mxu0 0
      %1987 = vmatpush1.bf16.msra.mxu0 0
      %1988 = vmatprep.subr.bf16.mxu0 0
      %1989 = vmatpush1.bf16.msra.mxu0 0
      %1990 = vmatprep.subr.bf16.mxu0 0
      %1991 = vmatpush1.bf16.msra.mxu0 0
      %1992 = vmatprep.subr.bf16.mxu0 0
      %1993 = vmatpush1.bf16.msra.mxu0 0
      %1994 = vmatprep.subr.bf16.mxu0 0
      %1995 = vmatpush1.bf16.msra.mxu0 0
      %1996 = vmatprep.subr.bf16.mxu0 0
      %1997 = vmatpush1.bf16.msra.mxu0 0
      %1998 = vmatprep.subr.bf16.mxu0 0
      %1999 = vmatpush1.bf16.msra.mxu0 0
      %2000 = vmatprep.mubr.bf16.mxu0 0
      %2001 = vmatmul.mubr.bf16.gmra.mrb[0].mxu0 %v1966
      %v2002 = vpop.f32.mrb[0].mxu0
      %v2003 = vadd.f32 %v1951, %v2002
      %v2004 = vpop.f32.mrb[0].mxu0
      %v2005 = vpop.f32.mrb[0].mxu0
      %v2006 = vadd.f32 %v1951, %v2005
      %v2007 = vpop.f32.mrb[0].mxu0
      %2008 = vdwg.mxu0
      %v2009 = vadd.f32 %v1059, %v2003
      %v2010 = vadd.f32 %v1060, %v2006
      %v2011 = vld [vmem:[%s947] sm:$0x1]
      %v2012 = vld [vmem:[%s950] sm:$0x1]
      %v2013 = vsel %vm1017, %v2009, 0.0
      %2014 = vadd.xlane.f32.xlu0 %v2013
      %v2015 = vpop.xlane.xlu0 %2014
      %v2016 = vsel %vm1017, %v2010, 0.0
      %2017 = vadd.xlane.f32.xlu0 %v2016
      %v2018 = vpop.xlane.xlu0 %2017
      %v2019 = vmul.f32 %v2015, %v1024
      %v2020 = vmul.f32 %v2018, %v1024
      %v2021 = vsub.f32 %v2009, %v2019
      %v2022 = vsub.f32 %v2010, %v2020
      %v2023 = vmul.f32 %v2021, %v2021
      %v2024 = vmul.f32 %v2022, %v2022
      %v2025 = vsel %vm1017, %v2023, 0.0
      %2026 = vadd.xlane.f32.xlu0 %v2025
      %v2027 = vpop.xlane.xlu0 %2026
      %v2028 = vsel %vm1017, %v2024, 0.0
      %2029 = vadd.xlane.f32.xlu0 %v2028
      %v2030 = vpop.xlane.xlu0 %2029
      %v2031 = vmul.f32 %v2027, %v1024
      %v2032 = vmul.f32 %v2030, %v1024
      %v2033 = vadd.f32 %v2031, 1e-05
      %v2034 = vadd.f32 %v2032, 1e-05
      %v2035 = vrsqrt.pop %v2033
      %v2036 = vrsqrt.pop %v2034
      %v2037 = vmul.f32 %v2021, %v2035
      %v2038 = vmul.f32 %v2022, %v2036
      %v2040 = vlaneseq
      %v2041 = vshrl.u32 %v2040, 7
      %v2042 = vsub.s32 0, %v2041
      %v2043 = vrot.slane %v2011, %v2042
      %v2045 = vmul.f32 %v2037, %v2043
      %v2046 = vmul.f32 %v2038, %v2043
      %v2048 = vlaneseq
      %v2049 = vshrl.u32 %v2048, 7
      %v2050 = vsub.s32 0, %v2049
      %v2051 = vrot.slane %v2012, %v2050
      %v2053 = vadd.f32 %v2045, %v2051
      %v2054 = vadd.f32 %v2046, %v2051
      %v2055 = vpack.c.bf16 %v2054, %v2053
      %v2056 = vld [vmem:[%s955] sm:$0xf]
      %v2057 = vld [vmem:[%s955 + $0x4] sm:$0xf]
      %v2058 = vld [vmem:[%s955 + $0x8] sm:$0xf]
      %v2059 = vld [vmem:[%s955 + $0xc] sm:$0xf]
      %v2060 = vld [vmem:[%s958] sm:$0x1]
      %v2062 = vlaneseq
      %v2063 = vshrl.u32 %v2062, 7
      %v2064 = vsub.s32 0, %v2063
      %v2065 = vrot.slane %v2060, %v2064
      %v2071 = vunpack.c.l.b16 %v2056
      %v2072 = vunpack.c.l.b16 %v2057
      %v2073 = vunpack.c.l.b16 %v2058
      %v2074 = vunpack.c.l.b16 %v2059
      %v2075 = vpack.c.b16 %v2072, %v2071
      %v2076 = vpack.c.b16 %v2074, %v2073
      %v2080 = vsel %vm1017, %v2055, 0
      %2082 = vmatprep.subr.bf16.mxu0 0
      %2083 = vmatpush1.bf16.msra.mxu0 %v2075
      %2084 = vmatprep.subr.bf16.mxu0 0
      %2085 = vmatpush1.bf16.msra.mxu0 %v2076
      %2086 = vmatprep.subr.bf16.mxu0 0
      %2087 = vmatpush1.bf16.msra.mxu0 0
      %2088 = vmatprep.subr.bf16.mxu0 0
      %2089 = vmatpush1.bf16.msra.mxu0 0
      %2090 = vmatprep.subr.bf16.mxu0 0
      %2091 = vmatpush1.bf16.msra.mxu0 0
      %2092 = vmatprep.subr.bf16.mxu0 0
      %2093 = vmatpush1.bf16.msra.mxu0 0
      %2094 = vmatprep.subr.bf16.mxu0 0
      %2095 = vmatpush1.bf16.msra.mxu0 0
      %2096 = vmatprep.subr.bf16.mxu0 0
      %2097 = vmatpush1.bf16.msra.mxu0 0
      %2098 = vmatprep.subr.bf16.mxu0 0
      %2099 = vmatpush1.bf16.msra.mxu0 0
      %2100 = vmatprep.subr.bf16.mxu0 0
      %2101 = vmatpush1.bf16.msra.mxu0 0
      %2102 = vmatprep.subr.bf16.mxu0 0
      %2103 = vmatpush1.bf16.msra.mxu0 0
      %2104 = vmatprep.subr.bf16.mxu0 0
      %2105 = vmatpush1.bf16.msra.mxu0 0
      %2106 = vmatprep.subr.bf16.mxu0 0
      %2107 = vmatpush1.bf16.msra.mxu0 0
      %2108 = vmatprep.subr.bf16.mxu0 0
      %2109 = vmatpush1.bf16.msra.mxu0 0
      %2110 = vmatprep.subr.bf16.mxu0 0
      %2111 = vmatpush1.bf16.msra.mxu0 0
      %2112 = vmatprep.subr.bf16.mxu0 0
      %2113 = vmatpush1.bf16.msra.mxu0 0
      %2114 = vmatprep.mubr.bf16.mxu0 0
      %2115 = vmatmul.mubr.bf16.gmra.mrb[0].mxu0 %v2080
      %v2116 = vpop.f32.mrb[0].mxu0
      %v2117 = vadd.f32 %v2065, %v2116
      %v2118 = vpop.f32.mrb[0].mxu0
      %v2119 = vpop.f32.mrb[0].mxu0
      %v2120 = vadd.f32 %v2065, %v2119
      %v2121 = vpop.f32.mrb[0].mxu0
      %2122 = vdwg.mxu0
      %v2123 = vmax.f32 %v2117, 0.0
      %v2124 = vmax.f32 %v2120, 0.0
      %v2125 = vpack.c.bf16 %v2124, %v2123
      %v2126 = vld [vmem:[%s963] sm:$0xf]
      %v2127 = vld [vmem:[%s963 + $0x4] sm:$0xf]
      %v2128 = vld [vmem:[%s963 + $0x8] sm:$0xf]
      %v2129 = vld [vmem:[%s963 + $0xc] sm:$0xf]
      %v2130 = vld [vmem:[%s966] sm:$0x1]
      %v2132 = vlaneseq
      %v2133 = vshrl.u32 %v2132, 7
      %v2134 = vsub.s32 0, %v2133
      %v2135 = vrot.slane %v2130, %v2134
      %v2141 = vunpack.c.l.b16 %v2126
      %v2142 = vunpack.c.l.b16 %v2127
      %v2143 = vunpack.c.l.b16 %v2128
      %v2144 = vunpack.c.l.b16 %v2129
      %v2145 = vpack.c.b16 %v2142, %v2141
      %v2146 = vpack.c.b16 %v2144, %v2143
      %v2150 = vsel %vm1017, %v2125, 0
      %2152 = vmatprep.subr.bf16.mxu0 0
      %2153 = vmatpush1.bf16.msra.mxu0 %v2145
      %2154 = vmatprep.subr.bf16.mxu0 0
      %2155 = vmatpush1.bf16.msra.mxu0 %v2146
      %2156 = vmatprep.subr.bf16.mxu0 0
      %2157 = vmatpush1.bf16.msra.mxu0 0
      %2158 = vmatprep.subr.bf16.mxu0 0
      %2159 = vmatpush1.bf16.msra.mxu0 0
      %2160 = vmatprep.subr.bf16.mxu0 0
      %2161 = vmatpush1.bf16.msra.mxu0 0
      %2162 = vmatprep.subr.bf16.mxu0 0
      %2163 = vmatpush1.bf16.msra.mxu0 0
      %2164 = vmatprep.subr.bf16.mxu0 0
      %2165 = vmatpush1.bf16.msra.mxu0 0
      %2166 = vmatprep.subr.bf16.mxu0 0
      %2167 = vmatpush1.bf16.msra.mxu0 0
      %2168 = vmatprep.subr.bf16.mxu0 0
      %2169 = vmatpush1.bf16.msra.mxu0 0
      %2170 = vmatprep.subr.bf16.mxu0 0
      %2171 = vmatpush1.bf16.msra.mxu0 0
      %2172 = vmatprep.subr.bf16.mxu0 0
      %2173 = vmatpush1.bf16.msra.mxu0 0
      %2174 = vmatprep.subr.bf16.mxu0 0
      %2175 = vmatpush1.bf16.msra.mxu0 0
      %2176 = vmatprep.subr.bf16.mxu0 0
      %2177 = vmatpush1.bf16.msra.mxu0 0
      %2178 = vmatprep.subr.bf16.mxu0 0
      %2179 = vmatpush1.bf16.msra.mxu0 0
      %2180 = vmatprep.subr.bf16.mxu0 0
      %2181 = vmatpush1.bf16.msra.mxu0 0
      %2182 = vmatprep.subr.bf16.mxu0 0
      %2183 = vmatpush1.bf16.msra.mxu0 0
      %2184 = vmatprep.mubr.bf16.mxu0 0
      %2185 = vmatmul.mubr.bf16.gmra.mrb[0].mxu0 %v2150
      %v2186 = vpop.f32.mrb[0].mxu0
      %v2187 = vadd.f32 %v2135, %v2186
      %v2188 = vpop.f32.mrb[0].mxu0
      %v2189 = vpop.f32.mrb[0].mxu0
      %v2190 = vadd.f32 %v2135, %v2189
      %v2191 = vpop.f32.mrb[0].mxu0
      %2192 = vdwg.mxu0
      %v2193 = vadd.f32 %v2053, %v2187
      %v2194 = vadd.f32 %v2054, %v2190
      %2196 = vset.pattern.permute.xlu0 0
      %2197 = vperm.xlu0 %2196, %v1013
      %v2198 = vpop.permute.xlu0 %2197
      %2201 = vset.pattern.permute.xlu0 0
      %2202 = vperm.xlu0 %2201, %v1014
      %v2203 = vpop.permute.xlu0 %2202
      %v2205 = vmul.f32 %v2193, %v2198
      %v2206 = vmul.f32 %v2194, %v2203
      %2207 = vst.msk [vmem:[#allocation2] sm:$0xff] %vm1017, %v2205
      %2208 = vst.msk [vmem:[#allocation2 + $0x8] sm:$0xff] %vm1017, %v2206
      %p2209 = scmp.eq.s32.totalorder %s37, 1
      // Predicated region
      $region109: #{sas_forward.1} parent=103 // pred_check
        %p2210 = pneg %p2209
      $region110: #{sas_forward.1} parent=103 // pred_check_branch
        %2212 = sbr.rel (%p2210) target = $region112
      $region111: #{sas_forward.1} parent=103 // pred_region
        %v2213 = vld [vmem:[%s19] sm:$0x1]
        %v2214 = vld [vmem:[%s20] sm:$0x1]
        %v2215 = vsel %vm1017, %v2205, 0.0
        %2216 = vadd.xlane.f32.xlu0 %v2215
        %v2217 = vpop.xlane.xlu0 %2216
        %v2218 = vsel %vm1017, %v2206, 0.0
        %2219 = vadd.xlane.f32.xlu0 %v2218
        %v2220 = vpop.xlane.xlu0 %2219
        %v2221 = vmul.f32 %v2217, %v1024
        %v2222 = vmul.f32 %v2220, %v1024
        %v2223 = vsub.f32 %v2205, %v2221
        %v2224 = vsub.f32 %v2206, %v2222
        %v2225 = vmul.f32 %v2223, %v2223
        %v2226 = vmul.f32 %v2224, %v2224
        %v2227 = vsel %vm1017, %v2225, 0.0
        %2228 = vadd.xlane.f32.xlu0 %v2227
        %v2229 = vpop.xlane.xlu0 %2228
        %v2230 = vsel %vm1017, %v2226, 0.0
        %2231 = vadd.xlane.f32.xlu0 %v2230
        %v2232 = vpop.xlane.xlu0 %2231
        %v2233 = vmul.f32 %v2229, %v1024
        %v2234 = vmul.f32 %v2232, %v1024
        %v2235 = vadd.f32 %v2233, 1e-08
        %v2236 = vadd.f32 %v2234, 1e-08
        %v2237 = vrsqrt.pop %v2235
        %v2238 = vrsqrt.pop %v2236
        %v2239 = vmul.f32 %v2223, %v2237
        %v2240 = vmul.f32 %v2224, %v2238
        %v2242 = vlaneseq
        %v2243 = vshrl.u32 %v2242, 7
        %v2244 = vsub.s32 0, %v2243
        %v2245 = vrot.slane %v2213, %v2244
        %v2247 = vmul.f32 %v2239, %v2245
        %v2248 = vmul.f32 %v2240, %v2245
        %v2250 = vlaneseq
        %v2251 = vshrl.u32 %v2250, 7
        %v2252 = vsub.s32 0, %v2251
        %v2253 = vrot.slane %v2214, %v2252
        %v2255 = vadd.f32 %v2247, %v2253
        %v2256 = vadd.f32 %v2248, %v2253
        %2257 = vst.msk [vmem:[%s971] sm:$0xff] %vm1017, %v2255
        %2258 = vst.msk [vmem:[%s971 + $0x8] sm:$0xff] %vm1017, %v2256
      $region112: #{sas_forward.1} parent=103 // pred_fallthru
        _
      %s2259 = smul.u32 2, %s36
      %p2260 = scmp.lt.s32.totalorder %s2259, 3
      %s2261 = scalar_select %p2260, %s2259, 3
      %s2262 = smul.addr %s2261, 8
      %s2263 = scalar_lea.vmem %s21, %s2262
      // Predicated region
      $region113: #{sas_forward.1} parent=103 // pred_check
        %p2264 = pneg %p598
      $region114: #{sas_forward.1} parent=103 // pred_check_branch
        %2266 = sbr.rel (%p2264) target = $region116
      $region115: #{sas_forward.1} parent=103 // pred_region
        %s2267 = smul.u32 2, %s36
      $region116: #{sas_forward.1} parent=103 // pred_fallthru
        _
    $region104: #{sas_forward.1} parent=5 // pred_fallthru
      _
    %p2268 = scmp.le.s32.totalorder 2, %s27
    // Predicated region
    $region117: #{sas_forward.1} parent=5 // pred_check
      %p2269 = pneg %p2268
    $region118: #{sas_forward.1} parent=5 // pred_check_branch
      %2271 = sbr.rel (%p2269) target = $region120
    $region119: #{sas_forward.1} parent=5 // pred_region
      %s2272 = ssub.s32 %s27, 2
      // Predicated region
      $region121: #{sas_forward.1} parent=119 // pred_check
        %p2273 = pneg %p604
      $region122: #{sas_forward.1} parent=119 // pred_check_branch
        %2275 = sbr.rel (%p2273) target = $region124
      $region123: #{sas_forward.1} parent=119 // pred_region
        %s2276 = smul.u32 2, %s38
        %p2277 = scmp.lt.s32.totalorder %s2276, 3
        %s2278 = scalar_select %p2277, %s2276, 3
        %s2279 = smul.addr %s2278, 8
        %s2280 = scalar_lea.vmem %s21, %s2279
      $region124: #{sas_forward.1} parent=119 // pred_fallthru
        _
    $region120: #{sas_forward.1} parent=5 // pred_fallthru
      _
  $region6: #{sas_forward.1} parent=0 // loop_footer
    %s31 = sadd.s32 1, %s27
  $region7: #{sas_forward.1} parent=0 // loop_footer_branch
    %26 = sbr.rel target = $region3
  $region8: #{sas_forward.1} parent=0 // loop_exit
    _

</llo_original>
